<compile_context>
chip_gen: v7x
topology: tpu7x:2x2x1
jax: 0.10.0
libtpu: 0.0.40
codegen_flags: <defaults>
</compile_context>

<pallas_src>
import numpy as np
import jax
import jax.numpy as jnp
from jax import lax
from jax.experimental import pallas as pl
from jax.experimental.pallas import tpu as pltpu

INPUT_SIZE = 13
HIDDEN_SIZE = 50
OUT_SIZE = 13

# Lane/sublane-padded sizes (vreg is 8 sublanes x 128 lanes).
IN_PAD = 16         # input features padded 13 -> 16 (small K matmul; cheap DMA)
H_PAD = 128         # per-gate hidden padded 50 -> 128 (gate slices lane-aligned)
G4 = 4 * H_PAD      # fused gate width, repacked as [i | f | o | g]
OUT_PAD = 128       # linear output padded 13 -> 128 (lane-dense unmasked store)
SUBLANES = 8        # batch padded to a multiple of 8 sublanes


def _lstm_linear_kernel(x_ref, lens_ref, wx_ref, wh_ref, bg_ref, wl_ref, bl_ref,
                        out_ref, xproj_ref, hbuf_ref):
    """Single-invocation kernel: the whole (small) problem lives in VMEM.

    x_ref    : (T*Bp, IN_PAD)     bf16 time-major flattened, zero-padded inputs
    lens_ref : (Bp, 1)            i32  sequence lengths (0 for padded batch rows)
    wx_ref   : (IN_PAD, 4*H_PAD)  bf16 fused input->gate weights  [i|f|o|g]
    wh_ref   : (H_PAD, 4*H_PAD)   bf16 fused hidden->gate weights [i|f|o|g]
    bg_ref   : (1, 4*H_PAD)       f32  fused gate bias (b_ih + b_hh), zero-padded
    wl_ref   : (H_PAD, OUT_PAD)   bf16 final linear weight (transposed, zero-padded)
    bl_ref   : (1, OUT_PAD)       f32  final linear bias (zero-padded)
    out_ref  : (T, Bp, OUT_PAD)   f32  time-major output
    xproj_ref: (T, Bp, 4*H_PAD)   bf16 scratch: x @ Wx + b, hoisted out of the loop
    hbuf_ref : (T, Bp, H_PAD)     bf16 scratch: per-step masked hidden states
    """
    T, Bp, _ = out_ref.shape
    Hp = wh_ref.shape[0]

    # ---- 1) Hoisted input projection: one big bf16 matmul, off critical path.
    xproj = (jnp.dot(x_ref[...], wx_ref[...], preferred_element_type=jnp.float32)
             + bg_ref[...])
    xproj_ref[...] = xproj.astype(xproj_ref.dtype).reshape(T, Bp, 4 * Hp)

    wh = wh_ref[...]            # hoisted: loop body only does h @ Wh
    lens = lens_ref[...]        # (Bp, 1) i32, hoisted

    # ---- 2) Recurrence: one fused (Bp,H)@(H,4H) bf16 matmul per step. -------
    # Zero-padded weight/bias columns keep c/h exactly 0 in padding lanes
    # (sigmoid(0)=0.5, tanh(0)=0 => c,h stay 0), so padding never leaks.
    # TODO(synk): if the bundle dump shows Wh re-pushed into the MXU each step,
    # drive it explicitly (pltpu.matmul_push_rhs once, matmul_acc_lhs/pop per
    # step) to keep the weight resident across the whole recurrence.
    def step(t, carry):
        h, c = carry
        pre = xproj_ref[t].astype(jnp.float32) + jnp.dot(
            h.astype(jnp.bfloat16), wh, preferred_element_type=jnp.float32)
        # one EUP sigmoid (tanh form) over the contiguous i|f|o slice, one tanh.
        sig = 0.5 * jnp.tanh(0.5 * pre[:, 0:3 * Hp]) + 0.5
        g_g = jnp.tanh(pre[:, 3 * Hp:4 * Hp])
        i_g = sig[:, 0 * Hp:1 * Hp]
        f_g = sig[:, 1 * Hp:2 * Hp]
        o_g = sig[:, 2 * Hp:3 * Hp]
        c_new = f_g * c + i_g * g_g
        h_new = o_g * jnp.tanh(c_new)
        # per-step length mask (off the carry chain; hides under next matmul)
        hbuf_ref[t] = jnp.where(lens > t, h_new, 0.0).astype(hbuf_ref.dtype)
        return (h_new, c_new)

    h0 = jnp.zeros((Bp, Hp), jnp.float32)
    c0 = jnp.zeros((Bp, Hp), jnp.float32)
    lax.fori_loop(0, T, step, (h0, c0), unroll=(True if T <= 32 else 8))

    # ---- 3) Hoisted final Linear: one lane-dense bf16 matmul + unmasked store.
    y = (jnp.dot(hbuf_ref[...].reshape(T * Bp, Hp), wl_ref[...],
                 preferred_element_type=jnp.float32)
         + bl_ref[...])
    out_ref[...] = y.reshape(T, Bp, out_ref.shape[-1])


def _pad2(a, rows, cols):
    return jnp.pad(a, ((0, rows - a.shape[0]), (0, cols - a.shape[1])))


def make_torch_params(key):
    """PyTorch-default-shaped LSTM(13,50)+Linear(50,13) params, U(-1/sqrt(H), 1/sqrt(H))."""
    H, I, O = HIDDEN_SIZE, INPUT_SIZE, OUT_SIZE
    k = jax.random.split(key, 6)
    bound = 1.0 / np.sqrt(H)
    w_ih = jax.random.uniform(k[0], (4 * H, I), jnp.float32, -bound, bound)
    w_hh = jax.random.uniform(k[1], (4 * H, H), jnp.float32, -bound, bound)
    b_ih = jax.random.uniform(k[2], (4 * H,), jnp.float32, -bound, bound)
    b_hh = jax.random.uniform(k[3], (4 * H,), jnp.float32, -bound, bound)
    w_lin = jax.random.uniform(k[4], (O, H), jnp.float32, -bound, bound)
    b_lin = jax.random.uniform(k[5], (O,), jnp.float32, -bound, bound)
    return (w_ih, w_hh, b_ih, b_hh, w_lin, b_lin)


def pack_kernel_params(raw):
    """Fuse gates (reordered [i|f|o|g]), zero-pad feature axes, bf16 matmul weights."""
    w_ih, w_hh, b_ih, b_hh, w_lin, b_lin = raw
    H, I, O = HIDDEN_SIZE, INPUT_SIZE, OUT_SIZE
    wx_g = w_ih.reshape(4, H, I)     # PyTorch gate order: i, f, g, o
    wh_g = w_hh.reshape(4, H, H)
    b_g = (b_ih + b_hh).reshape(4, H)
    order = (0, 1, 3, 2)             # repack as [i | f | o | g]
    wx = jnp.concatenate([_pad2(wx_g[g].T, IN_PAD, H_PAD) for g in order],
                         axis=1).astype(jnp.bfloat16)
    wh = jnp.concatenate([_pad2(wh_g[g].T, H_PAD, H_PAD) for g in order],
                         axis=1).astype(jnp.bfloat16)
    bg = jnp.concatenate([jnp.pad(b_g[g], (0, H_PAD - H)) for g in order]
                         ).reshape(1, G4)                      # f32 bias
    wl = _pad2(w_lin.T, H_PAD, OUT_PAD).astype(jnp.bfloat16)
    bl = jnp.pad(b_lin, (0, OUT_PAD - O)).reshape(1, OUT_PAD)  # f32 bias
    return (wx, wh, bg, wl, bl)


def air_model_forward(x, lengths, kernel_params):
    """x: (B, T, 13) batch-first f32; lengths: host int array (B,), all >= 1.

    Returns (B, max(lengths), 13) f32, matching
    linear(pad_packed_sequence(lstm(pack_padded_sequence(x, lengths)))).
    lengths must be concrete (host-side), like PyTorch's pack_padded_sequence.
    """
    wx, wh, bg, wl, bl = kernel_params
    B, _, I = x.shape
    max_len = int(np.max(np.asarray(lengths)))       # pad_packed pads to max length
    b_pad = max(SUBLANES, ((B + SUBLANES - 1) // SUBLANES) * SUBLANES)

    x_tm = jnp.transpose(x[:, :max_len, :], (1, 0, 2))                  # (T, B, I)
    x_tm = jnp.pad(x_tm, ((0, 0), (0, b_pad - B), (0, IN_PAD - I)))     # (T, Bp, 16)
    x2d = x_tm.reshape(max_len * b_pad, IN_PAD).astype(jnp.bfloat16)    # cheap DMA
    lens = jnp.zeros((b_pad, 1), jnp.int32).at[:B, 0].set(
        jnp.asarray(lengths, jnp.int32))

    # TODO(synk): for large B/T add a batch-parallel grid axis (v7x dual TC) and
    # time-chunked BlockSpec pipelining with an explicit vmem_limit_bytes budget
    # (~1.8 KiB per (t,b) with bf16 scratches) instead of full VMEM residency.
    out_tm = pl.pallas_call(
        _lstm_linear_kernel,
        out_shape=jax.ShapeDtypeStruct((max_len, b_pad, OUT_PAD), jnp.float32),
        in_specs=[pl.BlockSpec(memory_space=pltpu.MemorySpace.VMEM)] * 7,
        out_specs=pl.BlockSpec(memory_space=pltpu.MemorySpace.VMEM),
        scratch_shapes=[pltpu.VMEM((max_len, b_pad, G4), jnp.bfloat16),
                        pltpu.VMEM((max_len, b_pad, H_PAD), jnp.bfloat16)],
    )(x2d, lens, wx, wh, bg, wl, bl)

    return jnp.transpose(out_tm[:, :B, :OUT_SIZE], (1, 0, 2))           # (B, T, O)


def ref_forward(x, lengths, raw):
    """Pure-JAX f32 reference of the same computation (sanity check)."""
    w_ih, w_hh, b_ih, b_hh, w_lin, b_lin = raw
    H = HIDDEN_SIZE
    B = x.shape[0]
    max_len = int(np.max(np.asarray(lengths)))
    x = x[:, :max_len, :]
    lens = jnp.asarray(lengths, jnp.int32).reshape(B, 1)
    wx = jnp.transpose(w_ih.reshape(4, H, INPUT_SIZE), (0, 2, 1))
    wh = jnp.transpose(w_hh.reshape(4, H, H), (0, 2, 1))
    bg = (b_ih + b_hh).reshape(4, 1, H)
    wl = w_lin.T
    bl = b_lin.reshape(1, OUT_SIZE)
    h = jnp.zeros((B, H), jnp.float32)
    c = jnp.zeros((B, H), jnp.float32)
    outs = []
    for t in range(max_len):
        xt = x[:, t, :]
        i_g = jax.nn.sigmoid(xt @ wx[0] + h @ wh[0] + bg[0])
        f_g = jax.nn.sigmoid(xt @ wx[1] + h @ wh[1] + bg[1])
        g_g = jnp.tanh(xt @ wx[2] + h @ wh[2] + bg[2])
        o_g = jax.nn.sigmoid(xt @ wx[3] + h @ wh[3] + bg[3])
        c = f_g * c + i_g * g_g
        h = o_g * jnp.tanh(c)
        h_out = jnp.where(t < lens, h, 0.0)
        outs.append(h_out @ wl + bl)
    return jnp.stack(outs, axis=1)


if __name__ == "__main__":
    key = jax.random.PRNGKey(0)
    k_param, k_x = jax.random.split(key)

    B, T = 2, 8
    lengths = np.array([8, 5], dtype=np.int64)        # lengths on host, like PyTorch
    x = jax.random.normal(k_x, (B, T, INPUT_SIZE), jnp.float32)

    raw = make_torch_params(k_param)
    kparams = pack_kernel_params(raw)

    out = air_model_forward(x, lengths, kparams)
    out = jax.block_until_ready(out)

    ref = ref_forward(x, lengths, raw)
    assert out.shape == (B, int(lengths.max()), OUT_SIZE), out.shape
    # bf16 MXU operands + bf16 scratches: tolerance relaxed vs pure-f32 reference.
    np.testing.assert_allclose(np.asarray(out), np.asarray(ref),
                               rtol=2e-2, atol=2e-2)

    print("KERNEL_OK")
</pallas_src>

<mosaic_0001>
module attributes {stable_mosaic.version = 11 : i64} {
  func.func @_lstm_linear_kernel(%arg0: memref<64x16xbf16, #tpu.memory_space<vmem>>, %arg1: memref<8x1xi32, #tpu.memory_space<vmem>>, %arg2: memref<16x512xbf16, #tpu.memory_space<vmem>>, %arg3: memref<128x512xbf16, #tpu.memory_space<vmem>>, %arg4: memref<1x512xf32, #tpu.memory_space<vmem>>, %arg5: memref<128x128xbf16, #tpu.memory_space<vmem>>, %arg6: memref<1x128xf32, #tpu.memory_space<vmem>>, %arg7: memref<8x8x128xf32, #tpu.memory_space<vmem>>, %arg8: memref<8x8x512xbf16, #tpu.memory_space<vmem>>, %arg9: memref<8x8x128xbf16, #tpu.memory_space<vmem>>) attributes {dimension_semantics = [], scalar_prefetch = 0 : i64, scratch_operands = 2 : i64, tpu.core_type = #tpu.core_type<tc>} {
    %c0 = arith.constant 0 : index
    %c0_0 = arith.constant 0 : index
    %0 = vector.load %arg0[%c0, %c0_0] : memref<64x16xbf16, #tpu.memory_space<vmem>>, vector<64x16xbf16>
    %c0_1 = arith.constant 0 : index
    %c0_2 = arith.constant 0 : index
    %1 = vector.load %arg2[%c0_1, %c0_2] : memref<16x512xbf16, #tpu.memory_space<vmem>>, vector<16x512xbf16>
    %cst = arith.constant dense<0.000000e+00> : vector<64x512xf32>
    %2 = tpu.matmul %0, %1, %cst {dimension_numbers = #tpu.dot_dimension_numbers<[1], [0], [0], [1], [0, 0, 1, 1], [], []>} : vector<64x16xbf16>, vector<16x512xbf16>, vector<64x512xf32> -> vector<64x512xf32>
    %c0_3 = arith.constant 0 : index
    %c0_4 = arith.constant 0 : index
    %3 = vector.load %arg4[%c0_3, %c0_4] : memref<1x512xf32, #tpu.memory_space<vmem>>, vector<1x512xf32>
    %4 = vector.broadcast %3 : vector<1x512xf32> to vector<64x512xf32>
    %5 = arith.addf %2, %4 : vector<64x512xf32>
    %6 = arith.truncf %5 : vector<64x512xf32> to vector<64x512xbf16>
    %7 = vector.shape_cast %6 : vector<64x512xbf16> to vector<8x8x512xbf16>
    %c0_5 = arith.constant 0 : index
    %c0_6 = arith.constant 0 : index
    %c0_7 = arith.constant 0 : index
    %8 = vector.load %arg8[%c0_5, %c0_6, %c0_7] : memref<8x8x512xbf16, #tpu.memory_space<vmem>>, vector<8x8x512xbf16>
    tpu.vector_store %arg8[%c0_5, %c0_6, %c0_7], %7 {strides = array<i32>} : memref<8x8x512xbf16, #tpu.memory_space<vmem>>, vector<8x8x512xbf16>,
    %c0_8 = arith.constant 0 : index
    %c0_9 = arith.constant 0 : index
    %9 = vector.load %arg3[%c0_8, %c0_9] : memref<128x512xbf16, #tpu.memory_space<vmem>>, vector<128x512xbf16>
    %c0_10 = arith.constant 0 : index
    %c0_11 = arith.constant 0 : index
    %10 = vector.load %arg1[%c0_10, %c0_11] : memref<8x1xi32, #tpu.memory_space<vmem>>, vector<8x1xi32>
    %cst_12 = arith.constant 0.000000e+00 : f32
    %11 = vector.broadcast %cst_12 : f32 to vector<8x128xf32>
    %cst_13 = arith.constant 0.000000e+00 : f32
    %12 = vector.broadcast %cst_13 : f32 to vector<8x128xf32>
    %c0_i32 = arith.constant 0 : i32
    %13 = arith.index_cast %c0_i32 : i32 to index
    %c0_14 = arith.constant 0 : index
    %c0_15 = arith.constant 0 : index
    %14 = vector.load %arg8[%13, %c0_14, %c0_15] : memref<8x8x512xbf16, #tpu.memory_space<vmem>>, vector<1x8x512xbf16>
    %15 = vector.shape_cast %14 : vector<1x8x512xbf16> to vector<8x512xbf16>
    %16 = arith.extf %15 : vector<8x512xbf16> to vector<8x512xf32>
    %17 = arith.truncf %11 : vector<8x128xf32> to vector<8x128xbf16>
    %cst_16 = arith.constant dense<0.000000e+00> : vector<8x512xf32>
    %18 = tpu.matmul %17, %9, %cst_16 {dimension_numbers = #tpu.dot_dimension_numbers<[1], [0], [0], [1], [0, 0, 1, 1], [], []>} : vector<8x128xbf16>, vector<128x512xbf16>, vector<8x512xf32> -> vector<8x512xf32>
    %19 = arith.addf %16, %18 : vector<8x512xf32>
    %20 = vector.extract_strided_slice %19 {offsets = [0, 0], sizes = [8, 384], strides = [1, 1]} : vector<8x512xf32> to vector<8x384xf32>
    %cst_17 = arith.constant 5.000000e-01 : f32
    %21 = vector.broadcast %cst_17 : f32 to vector<8x384xf32>
    %22 = arith.mulf %21, %20 : vector<8x384xf32>
    %23 = math.tanh %22 : vector<8x384xf32>
    %cst_18 = arith.constant 5.000000e-01 : f32
    %24 = vector.broadcast %cst_18 : f32 to vector<8x384xf32>
    %25 = arith.mulf %24, %23 : vector<8x384xf32>
    %cst_19 = arith.constant 5.000000e-01 : f32
    %26 = vector.broadcast %cst_19 : f32 to vector<8x384xf32>
    %27 = arith.addf %25, %26 : vector<8x384xf32>
    %28 = vector.extract_strided_slice %19 {offsets = [0, 384], sizes = [8, 128], strides = [1, 1]} : vector<8x512xf32> to vector<8x128xf32>
    %29 = math.tanh %28 : vector<8x128xf32>
    %30 = vector.extract_strided_slice %27 {offsets = [0, 0], sizes = [8, 128], strides = [1, 1]} : vector<8x384xf32> to vector<8x128xf32>
    %31 = vector.extract_strided_slice %27 {offsets = [0, 128], sizes = [8, 128], strides = [1, 1]} : vector<8x384xf32> to vector<8x128xf32>
    %32 = vector.extract_strided_slice %27 {offsets = [0, 256], sizes = [8, 128], strides = [1, 1]} : vector<8x384xf32> to vector<8x128xf32>
    %33 = arith.mulf %31, %12 : vector<8x128xf32>
    %34 = arith.mulf %30, %29 : vector<8x128xf32>
    %35 = arith.addf %33, %34 : vector<8x128xf32>
    %36 = math.tanh %35 : vector<8x128xf32>
    %37 = arith.mulf %32, %36 : vector<8x128xf32>
    %38 = vector.broadcast %c0_i32 : i32 to vector<8x1xi32>
    %39 = arith.cmpi sgt, %10, %38 : vector<8x1xi32>
    %cst_20 = arith.constant 0.000000e+00 : f32
    %40 = vector.shape_cast %39 : vector<8x1xi1> to vector<8x1xi1>
    %41 = vector.broadcast %40 : vector<8x1xi1> to vector<8x128xi1>
    %42 = vector.broadcast %cst_20 : f32 to vector<8x128xf32>
    %43 = arith.select %41, %37, %42 : vector<8x128xi1>, vector<8x128xf32>
    %44 = arith.truncf %43 : vector<8x128xf32> to vector<8x128xbf16>
    %45 = arith.index_cast %c0_i32 : i32 to index
    %c0_21 = arith.constant 0 : index
    %c0_22 = arith.constant 0 : index
    %46 = vector.load %arg9[%45, %c0_21, %c0_22] : memref<8x8x128xbf16, #tpu.memory_space<vmem>>, vector<1x8x128xbf16>
    %47 = vector.shape_cast %46 : vector<1x8x128xbf16> to vector<8x128xbf16>
    %48 = vector.shape_cast %44 : vector<8x128xbf16> to vector<1x8x128xbf16>
    tpu.vector_store %arg9[%45, %c0_21, %c0_22], %48 {strides = array<i32>} : memref<8x8x128xbf16, #tpu.memory_space<vmem>>, vector<1x8x128xbf16>,
    %c1_i32 = arith.constant 1 : i32
    %49 = arith.index_cast %c1_i32 : i32 to index
    %c0_23 = arith.constant 0 : index
    %c0_24 = arith.constant 0 : index
    %50 = vector.load %arg8[%49, %c0_23, %c0_24] : memref<8x8x512xbf16, #tpu.memory_space<vmem>>, vector<1x8x512xbf16>
    %51 = vector.shape_cast %50 : vector<1x8x512xbf16> to vector<8x512xbf16>
    %52 = arith.extf %51 : vector<8x512xbf16> to vector<8x512xf32>
    %53 = arith.truncf %37 : vector<8x128xf32> to vector<8x128xbf16>
    %cst_25 = arith.constant dense<0.000000e+00> : vector<8x512xf32>
    %54 = tpu.matmul %53, %9, %cst_25 {dimension_numbers = #tpu.dot_dimension_numbers<[1], [0], [0], [1], [0, 0, 1, 1], [], []>} : vector<8x128xbf16>, vector<128x512xbf16>, vector<8x512xf32> -> vector<8x512xf32>
    %55 = arith.addf %52, %54 : vector<8x512xf32>
    %56 = vector.extract_strided_slice %55 {offsets = [0, 0], sizes = [8, 384], strides = [1, 1]} : vector<8x512xf32> to vector<8x384xf32>
    %cst_26 = arith.constant 5.000000e-01 : f32
    %57 = vector.broadcast %cst_26 : f32 to vector<8x384xf32>
    %58 = arith.mulf %57, %56 : vector<8x384xf32>
    %59 = math.tanh %58 : vector<8x384xf32>
    %cst_27 = arith.constant 5.000000e-01 : f32
    %60 = vector.broadcast %cst_27 : f32 to vector<8x384xf32>
    %61 = arith.mulf %60, %59 : vector<8x384xf32>
    %cst_28 = arith.constant 5.000000e-01 : f32
    %62 = vector.broadcast %cst_28 : f32 to vector<8x384xf32>
    %63 = arith.addf %61, %62 : vector<8x384xf32>
    %64 = vector.extract_strided_slice %55 {offsets = [0, 384], sizes = [8, 128], strides = [1, 1]} : vector<8x512xf32> to vector<8x128xf32>
    %65 = math.tanh %64 : vector<8x128xf32>
    %66 = vector.extract_strided_slice %63 {offsets = [0, 0], sizes = [8, 128], strides = [1, 1]} : vector<8x384xf32> to vector<8x128xf32>
    %67 = vector.extract_strided_slice %63 {offsets = [0, 128], sizes = [8, 128], strides = [1, 1]} : vector<8x384xf32> to vector<8x128xf32>
    %68 = vector.extract_strided_slice %63 {offsets = [0, 256], sizes = [8, 128], strides = [1, 1]} : vector<8x384xf32> to vector<8x128xf32>
    %69 = arith.mulf %67, %35 : vector<8x128xf32>
    %70 = arith.mulf %66, %65 : vector<8x128xf32>
    %71 = arith.addf %69, %70 : vector<8x128xf32>
    %72 = math.tanh %71 : vector<8x128xf32>
    %73 = arith.mulf %68, %72 : vector<8x128xf32>
    %74 = vector.broadcast %c1_i32 : i32 to vector<8x1xi32>
    %75 = arith.cmpi sgt, %10, %74 : vector<8x1xi32>
    %cst_29 = arith.constant 0.000000e+00 : f32
    %76 = vector.shape_cast %75 : vector<8x1xi1> to vector<8x1xi1>
    %77 = vector.broadcast %76 : vector<8x1xi1> to vector<8x128xi1>
    %78 = vector.broadcast %cst_29 : f32 to vector<8x128xf32>
    %79 = arith.select %77, %73, %78 : vector<8x128xi1>, vector<8x128xf32>
    %80 = arith.truncf %79 : vector<8x128xf32> to vector<8x128xbf16>
    %81 = arith.index_cast %c1_i32 : i32 to index
    %c0_30 = arith.constant 0 : index
    %c0_31 = arith.constant 0 : index
    %82 = vector.load %arg9[%81, %c0_30, %c0_31] : memref<8x8x128xbf16, #tpu.memory_space<vmem>>, vector<1x8x128xbf16>
    %83 = vector.shape_cast %82 : vector<1x8x128xbf16> to vector<8x128xbf16>
    %84 = vector.shape_cast %80 : vector<8x128xbf16> to vector<1x8x128xbf16>
    tpu.vector_store %arg9[%81, %c0_30, %c0_31], %84 {strides = array<i32>} : memref<8x8x128xbf16, #tpu.memory_space<vmem>>, vector<1x8x128xbf16>,
    %c2_i32 = arith.constant 2 : i32
    %85 = arith.index_cast %c2_i32 : i32 to index
    %c0_32 = arith.constant 0 : index
    %c0_33 = arith.constant 0 : index
    %86 = vector.load %arg8[%85, %c0_32, %c0_33] : memref<8x8x512xbf16, #tpu.memory_space<vmem>>, vector<1x8x512xbf16>
    %87 = vector.shape_cast %86 : vector<1x8x512xbf16> to vector<8x512xbf16>
    %88 = arith.extf %87 : vector<8x512xbf16> to vector<8x512xf32>
    %89 = arith.truncf %73 : vector<8x128xf32> to vector<8x128xbf16>
    %cst_34 = arith.constant dense<0.000000e+00> : vector<8x512xf32>
    %90 = tpu.matmul %89, %9, %cst_34 {dimension_numbers = #tpu.dot_dimension_numbers<[1], [0], [0], [1], [0, 0, 1, 1], [], []>} : vector<8x128xbf16>, vector<128x512xbf16>, vector<8x512xf32> -> vector<8x512xf32>
    %91 = arith.addf %88, %90 : vector<8x512xf32>
    %92 = vector.extract_strided_slice %91 {offsets = [0, 0], sizes = [8, 384], strides = [1, 1]} : vector<8x512xf32> to vector<8x384xf32>
    %cst_35 = arith.constant 5.000000e-01 : f32
    %93 = vector.broadcast %cst_35 : f32 to vector<8x384xf32>
    %94 = arith.mulf %93, %92 : vector<8x384xf32>
    %95 = math.tanh %94 : vector<8x384xf32>
    %cst_36 = arith.constant 5.000000e-01 : f32
    %96 = vector.broadcast %cst_36 : f32 to vector<8x384xf32>
    %97 = arith.mulf %96, %95 : vector<8x384xf32>
    %cst_37 = arith.constant 5.000000e-01 : f32
    %98 = vector.broadcast %cst_37 : f32 to vector<8x384xf32>
    %99 = arith.addf %97, %98 : vector<8x384xf32>
    %100 = vector.extract_strided_slice %91 {offsets = [0, 384], sizes = [8, 128], strides = [1, 1]} : vector<8x512xf32> to vector<8x128xf32>
    %101 = math.tanh %100 : vector<8x128xf32>
    %102 = vector.extract_strided_slice %99 {offsets = [0, 0], sizes = [8, 128], strides = [1, 1]} : vector<8x384xf32> to vector<8x128xf32>
    %103 = vector.extract_strided_slice %99 {offsets = [0, 128], sizes = [8, 128], strides = [1, 1]} : vector<8x384xf32> to vector<8x128xf32>
    %104 = vector.extract_strided_slice %99 {offsets = [0, 256], sizes = [8, 128], strides = [1, 1]} : vector<8x384xf32> to vector<8x128xf32>
    %105 = arith.mulf %103, %71 : vector<8x128xf32>
    %106 = arith.mulf %102, %101 : vector<8x128xf32>
    %107 = arith.addf %105, %106 : vector<8x128xf32>
    %108 = math.tanh %107 : vector<8x128xf32>
    %109 = arith.mulf %104, %108 : vector<8x128xf32>
    %110 = vector.broadcast %c2_i32 : i32 to vector<8x1xi32>
    %111 = arith.cmpi sgt, %10, %110 : vector<8x1xi32>
    %cst_38 = arith.constant 0.000000e+00 : f32
    %112 = vector.shape_cast %111 : vector<8x1xi1> to vector<8x1xi1>
    %113 = vector.broadcast %112 : vector<8x1xi1> to vector<8x128xi1>
    %114 = vector.broadcast %cst_38 : f32 to vector<8x128xf32>
    %115 = arith.select %113, %109, %114 : vector<8x128xi1>, vector<8x128xf32>
    %116 = arith.truncf %115 : vector<8x128xf32> to vector<8x128xbf16>
    %117 = arith.index_cast %c2_i32 : i32 to index
    %c0_39 = arith.constant 0 : index
    %c0_40 = arith.constant 0 : index
    %118 = vector.load %arg9[%117, %c0_39, %c0_40] : memref<8x8x128xbf16, #tpu.memory_space<vmem>>, vector<1x8x128xbf16>
    %119 = vector.shape_cast %118 : vector<1x8x128xbf16> to vector<8x128xbf16>
    %120 = vector.shape_cast %116 : vector<8x128xbf16> to vector<1x8x128xbf16>
    tpu.vector_store %arg9[%117, %c0_39, %c0_40], %120 {strides = array<i32>} : memref<8x8x128xbf16, #tpu.memory_space<vmem>>, vector<1x8x128xbf16>,
    %c3_i32 = arith.constant 3 : i32
    %121 = arith.index_cast %c3_i32 : i32 to index
    %c0_41 = arith.constant 0 : index
    %c0_42 = arith.constant 0 : index
    %122 = vector.load %arg8[%121, %c0_41, %c0_42] : memref<8x8x512xbf16, #tpu.memory_space<vmem>>, vector<1x8x512xbf16>
    %123 = vector.shape_cast %122 : vector<1x8x512xbf16> to vector<8x512xbf16>
    %124 = arith.extf %123 : vector<8x512xbf16> to vector<8x512xf32>
    %125 = arith.truncf %109 : vector<8x128xf32> to vector<8x128xbf16>
    %cst_43 = arith.constant dense<0.000000e+00> : vector<8x512xf32>
    %126 = tpu.matmul %125, %9, %cst_43 {dimension_numbers = #tpu.dot_dimension_numbers<[1], [0], [0], [1], [0, 0, 1, 1], [], []>} : vector<8x128xbf16>, vector<128x512xbf16>, vector<8x512xf32> -> vector<8x512xf32>
    %127 = arith.addf %124, %126 : vector<8x512xf32>
    %128 = vector.extract_strided_slice %127 {offsets = [0, 0], sizes = [8, 384], strides = [1, 1]} : vector<8x512xf32> to vector<8x384xf32>
    %cst_44 = arith.constant 5.000000e-01 : f32
    %129 = vector.broadcast %cst_44 : f32 to vector<8x384xf32>
    %130 = arith.mulf %129, %128 : vector<8x384xf32>
    %131 = math.tanh %130 : vector<8x384xf32>
    %cst_45 = arith.constant 5.000000e-01 : f32
    %132 = vector.broadcast %cst_45 : f32 to vector<8x384xf32>
    %133 = arith.mulf %132, %131 : vector<8x384xf32>
    %cst_46 = arith.constant 5.000000e-01 : f32
    %134 = vector.broadcast %cst_46 : f32 to vector<8x384xf32>
    %135 = arith.addf %133, %134 : vector<8x384xf32>
    %136 = vector.extract_strided_slice %127 {offsets = [0, 384], sizes = [8, 128], strides = [1, 1]} : vector<8x512xf32> to vector<8x128xf32>
    %137 = math.tanh %136 : vector<8x128xf32>
    %138 = vector.extract_strided_slice %135 {offsets = [0, 0], sizes = [8, 128], strides = [1, 1]} : vector<8x384xf32> to vector<8x128xf32>
    %139 = vector.extract_strided_slice %135 {offsets = [0, 128], sizes = [8, 128], strides = [1, 1]} : vector<8x384xf32> to vector<8x128xf32>
    %140 = vector.extract_strided_slice %135 {offsets = [0, 256], sizes = [8, 128], strides = [1, 1]} : vector<8x384xf32> to vector<8x128xf32>
    %141 = arith.mulf %139, %107 : vector<8x128xf32>
    %142 = arith.mulf %138, %137 : vector<8x128xf32>
    %143 = arith.addf %141, %142 : vector<8x128xf32>
    %144 = math.tanh %143 : vector<8x128xf32>
    %145 = arith.mulf %140, %144 : vector<8x128xf32>
    %146 = vector.broadcast %c3_i32 : i32 to vector<8x1xi32>
    %147 = arith.cmpi sgt, %10, %146 : vector<8x1xi32>
    %cst_47 = arith.constant 0.000000e+00 : f32
    %148 = vector.shape_cast %147 : vector<8x1xi1> to vector<8x1xi1>
    %149 = vector.broadcast %148 : vector<8x1xi1> to vector<8x128xi1>
    %150 = vector.broadcast %cst_47 : f32 to vector<8x128xf32>
    %151 = arith.select %149, %145, %150 : vector<8x128xi1>, vector<8x128xf32>
    %152 = arith.truncf %151 : vector<8x128xf32> to vector<8x128xbf16>
    %153 = arith.index_cast %c3_i32 : i32 to index
    %c0_48 = arith.constant 0 : index
    %c0_49 = arith.constant 0 : index
    %154 = vector.load %arg9[%153, %c0_48, %c0_49] : memref<8x8x128xbf16, #tpu.memory_space<vmem>>, vector<1x8x128xbf16>
    %155 = vector.shape_cast %154 : vector<1x8x128xbf16> to vector<8x128xbf16>
    %156 = vector.shape_cast %152 : vector<8x128xbf16> to vector<1x8x128xbf16>
    tpu.vector_store %arg9[%153, %c0_48, %c0_49], %156 {strides = array<i32>} : memref<8x8x128xbf16, #tpu.memory_space<vmem>>, vector<1x8x128xbf16>,
    %c4_i32 = arith.constant 4 : i32
    %157 = arith.index_cast %c4_i32 : i32 to index
    %c0_50 = arith.constant 0 : index
    %c0_51 = arith.constant 0 : index
    %158 = vector.load %arg8[%157, %c0_50, %c0_51] : memref<8x8x512xbf16, #tpu.memory_space<vmem>>, vector<1x8x512xbf16>
    %159 = vector.shape_cast %158 : vector<1x8x512xbf16> to vector<8x512xbf16>
    %160 = arith.extf %159 : vector<8x512xbf16> to vector<8x512xf32>
    %161 = arith.truncf %145 : vector<8x128xf32> to vector<8x128xbf16>
    %cst_52 = arith.constant dense<0.000000e+00> : vector<8x512xf32>
    %162 = tpu.matmul %161, %9, %cst_52 {dimension_numbers = #tpu.dot_dimension_numbers<[1], [0], [0], [1], [0, 0, 1, 1], [], []>} : vector<8x128xbf16>, vector<128x512xbf16>, vector<8x512xf32> -> vector<8x512xf32>
    %163 = arith.addf %160, %162 : vector<8x512xf32>
    %164 = vector.extract_strided_slice %163 {offsets = [0, 0], sizes = [8, 384], strides = [1, 1]} : vector<8x512xf32> to vector<8x384xf32>
    %cst_53 = arith.constant 5.000000e-01 : f32
    %165 = vector.broadcast %cst_53 : f32 to vector<8x384xf32>
    %166 = arith.mulf %165, %164 : vector<8x384xf32>
    %167 = math.tanh %166 : vector<8x384xf32>
    %cst_54 = arith.constant 5.000000e-01 : f32
    %168 = vector.broadcast %cst_54 : f32 to vector<8x384xf32>
    %169 = arith.mulf %168, %167 : vector<8x384xf32>
    %cst_55 = arith.constant 5.000000e-01 : f32
    %170 = vector.broadcast %cst_55 : f32 to vector<8x384xf32>
    %171 = arith.addf %169, %170 : vector<8x384xf32>
    %172 = vector.extract_strided_slice %163 {offsets = [0, 384], sizes = [8, 128], strides = [1, 1]} : vector<8x512xf32> to vector<8x128xf32>
    %173 = math.tanh %172 : vector<8x128xf32>
    %174 = vector.extract_strided_slice %171 {offsets = [0, 0], sizes = [8, 128], strides = [1, 1]} : vector<8x384xf32> to vector<8x128xf32>
    %175 = vector.extract_strided_slice %171 {offsets = [0, 128], sizes = [8, 128], strides = [1, 1]} : vector<8x384xf32> to vector<8x128xf32>
    %176 = vector.extract_strided_slice %171 {offsets = [0, 256], sizes = [8, 128], strides = [1, 1]} : vector<8x384xf32> to vector<8x128xf32>
    %177 = arith.mulf %175, %143 : vector<8x128xf32>
    %178 = arith.mulf %174, %173 : vector<8x128xf32>
    %179 = arith.addf %177, %178 : vector<8x128xf32>
    %180 = math.tanh %179 : vector<8x128xf32>
    %181 = arith.mulf %176, %180 : vector<8x128xf32>
    %182 = vector.broadcast %c4_i32 : i32 to vector<8x1xi32>
    %183 = arith.cmpi sgt, %10, %182 : vector<8x1xi32>
    %cst_56 = arith.constant 0.000000e+00 : f32
    %184 = vector.shape_cast %183 : vector<8x1xi1> to vector<8x1xi1>
    %185 = vector.broadcast %184 : vector<8x1xi1> to vector<8x128xi1>
    %186 = vector.broadcast %cst_56 : f32 to vector<8x128xf32>
    %187 = arith.select %185, %181, %186 : vector<8x128xi1>, vector<8x128xf32>
    %188 = arith.truncf %187 : vector<8x128xf32> to vector<8x128xbf16>
    %189 = arith.index_cast %c4_i32 : i32 to index
    %c0_57 = arith.constant 0 : index
    %c0_58 = arith.constant 0 : index
    %190 = vector.load %arg9[%189, %c0_57, %c0_58] : memref<8x8x128xbf16, #tpu.memory_space<vmem>>, vector<1x8x128xbf16>
    %191 = vector.shape_cast %190 : vector<1x8x128xbf16> to vector<8x128xbf16>
    %192 = vector.shape_cast %188 : vector<8x128xbf16> to vector<1x8x128xbf16>
    tpu.vector_store %arg9[%189, %c0_57, %c0_58], %192 {strides = array<i32>} : memref<8x8x128xbf16, #tpu.memory_space<vmem>>, vector<1x8x128xbf16>,
    %c5_i32 = arith.constant 5 : i32
    %193 = arith.index_cast %c5_i32 : i32 to index
    %c0_59 = arith.constant 0 : index
    %c0_60 = arith.constant 0 : index
    %194 = vector.load %arg8[%193, %c0_59, %c0_60] : memref<8x8x512xbf16, #tpu.memory_space<vmem>>, vector<1x8x512xbf16>
    %195 = vector.shape_cast %194 : vector<1x8x512xbf16> to vector<8x512xbf16>
    %196 = arith.extf %195 : vector<8x512xbf16> to vector<8x512xf32>
    %197 = arith.truncf %181 : vector<8x128xf32> to vector<8x128xbf16>
    %cst_61 = arith.constant dense<0.000000e+00> : vector<8x512xf32>
    %198 = tpu.matmul %197, %9, %cst_61 {dimension_numbers = #tpu.dot_dimension_numbers<[1], [0], [0], [1], [0, 0, 1, 1], [], []>} : vector<8x128xbf16>, vector<128x512xbf16>, vector<8x512xf32> -> vector<8x512xf32>
    %199 = arith.addf %196, %198 : vector<8x512xf32>
    %200 = vector.extract_strided_slice %199 {offsets = [0, 0], sizes = [8, 384], strides = [1, 1]} : vector<8x512xf32> to vector<8x384xf32>
    %cst_62 = arith.constant 5.000000e-01 : f32
    %201 = vector.broadcast %cst_62 : f32 to vector<8x384xf32>
    %202 = arith.mulf %201, %200 : vector<8x384xf32>
    %203 = math.tanh %202 : vector<8x384xf32>
    %cst_63 = arith.constant 5.000000e-01 : f32
    %204 = vector.broadcast %cst_63 : f32 to vector<8x384xf32>
    %205 = arith.mulf %204, %203 : vector<8x384xf32>
    %cst_64 = arith.constant 5.000000e-01 : f32
    %206 = vector.broadcast %cst_64 : f32 to vector<8x384xf32>
    %207 = arith.addf %205, %206 : vector<8x384xf32>
    %208 = vector.extract_strided_slice %199 {offsets = [0, 384], sizes = [8, 128], strides = [1, 1]} : vector<8x512xf32> to vector<8x128xf32>
    %209 = math.tanh %208 : vector<8x128xf32>
    %210 = vector.extract_strided_slice %207 {offsets = [0, 0], sizes = [8, 128], strides = [1, 1]} : vector<8x384xf32> to vector<8x128xf32>
    %211 = vector.extract_strided_slice %207 {offsets = [0, 128], sizes = [8, 128], strides = [1, 1]} : vector<8x384xf32> to vector<8x128xf32>
    %212 = vector.extract_strided_slice %207 {offsets = [0, 256], sizes = [8, 128], strides = [1, 1]} : vector<8x384xf32> to vector<8x128xf32>
    %213 = arith.mulf %211, %179 : vector<8x128xf32>
    %214 = arith.mulf %210, %209 : vector<8x128xf32>
    %215 = arith.addf %213, %214 : vector<8x128xf32>
    %216 = math.tanh %215 : vector<8x128xf32>
    %217 = arith.mulf %212, %216 : vector<8x128xf32>
    %218 = vector.broadcast %c5_i32 : i32 to vector<8x1xi32>
    %219 = arith.cmpi sgt, %10, %218 : vector<8x1xi32>
    %cst_65 = arith.constant 0.000000e+00 : f32
    %220 = vector.shape_cast %219 : vector<8x1xi1> to vector<8x1xi1>
    %221 = vector.broadcast %220 : vector<8x1xi1> to vector<8x128xi1>
    %222 = vector.broadcast %cst_65 : f32 to vector<8x128xf32>
    %223 = arith.select %221, %217, %222 : vector<8x128xi1>, vector<8x128xf32>
    %224 = arith.truncf %223 : vector<8x128xf32> to vector<8x128xbf16>
    %225 = arith.index_cast %c5_i32 : i32 to index
    %c0_66 = arith.constant 0 : index
    %c0_67 = arith.constant 0 : index
    %226 = vector.load %arg9[%225, %c0_66, %c0_67] : memref<8x8x128xbf16, #tpu.memory_space<vmem>>, vector<1x8x128xbf16>
    %227 = vector.shape_cast %226 : vector<1x8x128xbf16> to vector<8x128xbf16>
    %228 = vector.shape_cast %224 : vector<8x128xbf16> to vector<1x8x128xbf16>
    tpu.vector_store %arg9[%225, %c0_66, %c0_67], %228 {strides = array<i32>} : memref<8x8x128xbf16, #tpu.memory_space<vmem>>, vector<1x8x128xbf16>,
    %c6_i32 = arith.constant 6 : i32
    %229 = arith.index_cast %c6_i32 : i32 to index
    %c0_68 = arith.constant 0 : index
    %c0_69 = arith.constant 0 : index
    %230 = vector.load %arg8[%229, %c0_68, %c0_69] : memref<8x8x512xbf16, #tpu.memory_space<vmem>>, vector<1x8x512xbf16>
    %231 = vector.shape_cast %230 : vector<1x8x512xbf16> to vector<8x512xbf16>
    %232 = arith.extf %231 : vector<8x512xbf16> to vector<8x512xf32>
    %233 = arith.truncf %217 : vector<8x128xf32> to vector<8x128xbf16>
    %cst_70 = arith.constant dense<0.000000e+00> : vector<8x512xf32>
    %234 = tpu.matmul %233, %9, %cst_70 {dimension_numbers = #tpu.dot_dimension_numbers<[1], [0], [0], [1], [0, 0, 1, 1], [], []>} : vector<8x128xbf16>, vector<128x512xbf16>, vector<8x512xf32> -> vector<8x512xf32>
    %235 = arith.addf %232, %234 : vector<8x512xf32>
    %236 = vector.extract_strided_slice %235 {offsets = [0, 0], sizes = [8, 384], strides = [1, 1]} : vector<8x512xf32> to vector<8x384xf32>
    %cst_71 = arith.constant 5.000000e-01 : f32
    %237 = vector.broadcast %cst_71 : f32 to vector<8x384xf32>
    %238 = arith.mulf %237, %236 : vector<8x384xf32>
    %239 = math.tanh %238 : vector<8x384xf32>
    %cst_72 = arith.constant 5.000000e-01 : f32
    %240 = vector.broadcast %cst_72 : f32 to vector<8x384xf32>
    %241 = arith.mulf %240, %239 : vector<8x384xf32>
    %cst_73 = arith.constant 5.000000e-01 : f32
    %242 = vector.broadcast %cst_73 : f32 to vector<8x384xf32>
    %243 = arith.addf %241, %242 : vector<8x384xf32>
    %244 = vector.extract_strided_slice %235 {offsets = [0, 384], sizes = [8, 128], strides = [1, 1]} : vector<8x512xf32> to vector<8x128xf32>
    %245 = math.tanh %244 : vector<8x128xf32>
    %246 = vector.extract_strided_slice %243 {offsets = [0, 0], sizes = [8, 128], strides = [1, 1]} : vector<8x384xf32> to vector<8x128xf32>
    %247 = vector.extract_strided_slice %243 {offsets = [0, 128], sizes = [8, 128], strides = [1, 1]} : vector<8x384xf32> to vector<8x128xf32>
    %248 = vector.extract_strided_slice %243 {offsets = [0, 256], sizes = [8, 128], strides = [1, 1]} : vector<8x384xf32> to vector<8x128xf32>
    %249 = arith.mulf %247, %215 : vector<8x128xf32>
    %250 = arith.mulf %246, %245 : vector<8x128xf32>
    %251 = arith.addf %249, %250 : vector<8x128xf32>
    %252 = math.tanh %251 : vector<8x128xf32>
    %253 = arith.mulf %248, %252 : vector<8x128xf32>
    %254 = vector.broadcast %c6_i32 : i32 to vector<8x1xi32>
    %255 = arith.cmpi sgt, %10, %254 : vector<8x1xi32>
    %cst_74 = arith.constant 0.000000e+00 : f32
    %256 = vector.shape_cast %255 : vector<8x1xi1> to vector<8x1xi1>
    %257 = vector.broadcast %256 : vector<8x1xi1> to vector<8x128xi1>
    %258 = vector.broadcast %cst_74 : f32 to vector<8x128xf32>
    %259 = arith.select %257, %253, %258 : vector<8x128xi1>, vector<8x128xf32>
    %260 = arith.truncf %259 : vector<8x128xf32> to vector<8x128xbf16>
    %261 = arith.index_cast %c6_i32 : i32 to index
    %c0_75 = arith.constant 0 : index
    %c0_76 = arith.constant 0 : index
    %262 = vector.load %arg9[%261, %c0_75, %c0_76] : memref<8x8x128xbf16, #tpu.memory_space<vmem>>, vector<1x8x128xbf16>
    %263 = vector.shape_cast %262 : vector<1x8x128xbf16> to vector<8x128xbf16>
    %264 = vector.shape_cast %260 : vector<8x128xbf16> to vector<1x8x128xbf16>
    tpu.vector_store %arg9[%261, %c0_75, %c0_76], %264 {strides = array<i32>} : memref<8x8x128xbf16, #tpu.memory_space<vmem>>, vector<1x8x128xbf16>,
    %c7_i32 = arith.constant 7 : i32
    %265 = arith.index_cast %c7_i32 : i32 to index
    %c0_77 = arith.constant 0 : index
    %c0_78 = arith.constant 0 : index
    %266 = vector.load %arg8[%265, %c0_77, %c0_78] : memref<8x8x512xbf16, #tpu.memory_space<vmem>>, vector<1x8x512xbf16>
    %267 = vector.shape_cast %266 : vector<1x8x512xbf16> to vector<8x512xbf16>
    %268 = arith.extf %267 : vector<8x512xbf16> to vector<8x512xf32>
    %269 = arith.truncf %253 : vector<8x128xf32> to vector<8x128xbf16>
    %cst_79 = arith.constant dense<0.000000e+00> : vector<8x512xf32>
    %270 = tpu.matmul %269, %9, %cst_79 {dimension_numbers = #tpu.dot_dimension_numbers<[1], [0], [0], [1], [0, 0, 1, 1], [], []>} : vector<8x128xbf16>, vector<128x512xbf16>, vector<8x512xf32> -> vector<8x512xf32>
    %271 = arith.addf %268, %270 : vector<8x512xf32>
    %272 = vector.extract_strided_slice %271 {offsets = [0, 0], sizes = [8, 384], strides = [1, 1]} : vector<8x512xf32> to vector<8x384xf32>
    %cst_80 = arith.constant 5.000000e-01 : f32
    %273 = vector.broadcast %cst_80 : f32 to vector<8x384xf32>
    %274 = arith.mulf %273, %272 : vector<8x384xf32>
    %275 = math.tanh %274 : vector<8x384xf32>
    %cst_81 = arith.constant 5.000000e-01 : f32
    %276 = vector.broadcast %cst_81 : f32 to vector<8x384xf32>
    %277 = arith.mulf %276, %275 : vector<8x384xf32>
    %cst_82 = arith.constant 5.000000e-01 : f32
    %278 = vector.broadcast %cst_82 : f32 to vector<8x384xf32>
    %279 = arith.addf %277, %278 : vector<8x384xf32>
    %280 = vector.extract_strided_slice %271 {offsets = [0, 384], sizes = [8, 128], strides = [1, 1]} : vector<8x512xf32> to vector<8x128xf32>
    %281 = math.tanh %280 : vector<8x128xf32>
    %282 = vector.extract_strided_slice %279 {offsets = [0, 0], sizes = [8, 128], strides = [1, 1]} : vector<8x384xf32> to vector<8x128xf32>
    %283 = vector.extract_strided_slice %279 {offsets = [0, 128], sizes = [8, 128], strides = [1, 1]} : vector<8x384xf32> to vector<8x128xf32>
    %284 = vector.extract_strided_slice %279 {offsets = [0, 256], sizes = [8, 128], strides = [1, 1]} : vector<8x384xf32> to vector<8x128xf32>
    %285 = arith.mulf %283, %251 : vector<8x128xf32>
    %286 = arith.mulf %282, %281 : vector<8x128xf32>
    %287 = arith.addf %285, %286 : vector<8x128xf32>
    %288 = math.tanh %287 : vector<8x128xf32>
    %289 = arith.mulf %284, %288 : vector<8x128xf32>
    %290 = vector.broadcast %c7_i32 : i32 to vector<8x1xi32>
    %291 = arith.cmpi sgt, %10, %290 : vector<8x1xi32>
    %cst_83 = arith.constant 0.000000e+00 : f32
    %292 = vector.shape_cast %291 : vector<8x1xi1> to vector<8x1xi1>
    %293 = vector.broadcast %292 : vector<8x1xi1> to vector<8x128xi1>
    %294 = vector.broadcast %cst_83 : f32 to vector<8x128xf32>
    %295 = arith.select %293, %289, %294 : vector<8x128xi1>, vector<8x128xf32>
    %296 = arith.truncf %295 : vector<8x128xf32> to vector<8x128xbf16>
    %297 = arith.index_cast %c7_i32 : i32 to index
    %c0_84 = arith.constant 0 : index
    %c0_85 = arith.constant 0 : index
    %298 = vector.load %arg9[%297, %c0_84, %c0_85] : memref<8x8x128xbf16, #tpu.memory_space<vmem>>, vector<1x8x128xbf16>
    %299 = vector.shape_cast %298 : vector<1x8x128xbf16> to vector<8x128xbf16>
    %300 = vector.shape_cast %296 : vector<8x128xbf16> to vector<1x8x128xbf16>
    tpu.vector_store %arg9[%297, %c0_84, %c0_85], %300 {strides = array<i32>} : memref<8x8x128xbf16, #tpu.memory_space<vmem>>, vector<1x8x128xbf16>,
    %c8_i32 = arith.constant 8 : i32
    %c0_86 = arith.constant 0 : index
    %c0_87 = arith.constant 0 : index
    %c0_88 = arith.constant 0 : index
    %301 = vector.load %arg9[%c0_86, %c0_87, %c0_88] : memref<8x8x128xbf16, #tpu.memory_space<vmem>>, vector<8x8x128xbf16>
    %302 = vector.shape_cast %301 : vector<8x8x128xbf16> to vector<64x128xbf16>
    %c0_89 = arith.constant 0 : index
    %c0_90 = arith.constant 0 : index
    %303 = vector.load %arg5[%c0_89, %c0_90] : memref<128x128xbf16, #tpu.memory_space<vmem>>, vector<128x128xbf16>
    %cst_91 = arith.constant dense<0.000000e+00> : vector<64x128xf32>
    %304 = tpu.matmul %302, %303, %cst_91 {dimension_numbers = #tpu.dot_dimension_numbers<[1], [0], [0], [1], [0, 0, 1, 1], [], []>} : vector<64x128xbf16>, vector<128x128xbf16>, vector<64x128xf32> -> vector<64x128xf32>
    %c0_92 = arith.constant 0 : index
    %c0_93 = arith.constant 0 : index
    %305 = vector.load %arg6[%c0_92, %c0_93] : memref<1x128xf32, #tpu.memory_space<vmem>>, vector<1x128xf32>
    %306 = vector.broadcast %305 : vector<1x128xf32> to vector<64x128xf32>
    %307 = arith.addf %304, %306 : vector<64x128xf32>
    %308 = vector.shape_cast %307 : vector<64x128xf32> to vector<8x8x128xf32>
    %c0_94 = arith.constant 0 : index
    %c0_95 = arith.constant 0 : index
    %c0_96 = arith.constant 0 : index
    %309 = vector.load %arg7[%c0_94, %c0_95, %c0_96] : memref<8x8x128xf32, #tpu.memory_space<vmem>>, vector<8x8x128xf32>
    tpu.vector_store %arg7[%c0_94, %c0_95, %c0_96], %308 {strides = array<i32>} : memref<8x8x128xf32, #tpu.memory_space<vmem>>, vector<8x8x128xf32>,
    return
  }
}

</mosaic_0001>

<llo_original>
// kernel: tpu_custom_call.1
$region0: #{tpu_custom_call.1}
  #allocation0 [shape = 'u32[]', space=smem, size = 0x4, offset = 0x4, fixed_abs, tag = 'smem constant byte address 0x4 - core index']
  #allocation1 [shape = 'u32[144,128]{1,0:T(1,128)}', space=vmem, size = 0x12000, scoped, tag = 'internal scratch']
  #allocation2 [shape = 'bf16[8,8,512]{2,1,0:T(8,128)(2,1)}', space=vmem, size = 0x10000, scoped, tag = 'scratch operand']
  #allocation3 [shape = 'bf16[8,8,128]{2,1,0:T(8,128)(2,1)}', space=vmem, size = 0x4000, scoped, tag = 'scratch operand']
  %s0 = inlined_call_operand.vmem [shape: bf16[64,16], index: 0, kind: input, shape index: {}]
  %s1 = inlined_call_operand.vmem [shape: s32[8,1], index: 1, kind: input, shape index: {}]
  %s2 = inlined_call_operand.hbm [shape: bf16[16,512], index: 2, kind: input, shape index: {}]
  %s3 = inlined_call_operand.hbm [shape: bf16[128,512], index: 3, kind: input, shape index: {}]
  %s4 = inlined_call_operand.hbm [shape: f32[1,512], index: 4, kind: input, shape index: {}]
  %s5 = inlined_call_operand.vmem [shape: bf16[128,128], index: 5, kind: input, shape index: {}]
  %s6 = inlined_call_operand.vmem [shape: f32[1,128], index: 6, kind: input, shape index: {}]
  %s7 = inlined_call_operand.hbm [shape: f32[8,8,128], index: 7, kind: output, shape index: {}]
  %s8 = sld [smem:[#allocation0]]
  $region50: #{tpu_custom_call.1} parent=0
    _
  %s10 = ssub.s32 1, %s8
  %s11 = scalar_select 0, %s10, %s8
  $region1: #{tpu_custom_call.1} parent=0
    #allocation4 [shape = 'u8[16384]{0}', space=vmem, size = 0x4000, scoped, tag = 'input window, operand 2, single buffered']
    #allocation5 [shape = 's32[1]{0}', space=sflag, size = 0x4, scoped, tag = 'scoped memory for tpu_custom_call.1']
    #allocation6 [shape = 's32[1]{0}', space=sflag, size = 0x4, scoped, tag = 'scoped memory for tpu_custom_call.1']
    #allocation7 [shape = 'u8[131072]{0}', space=vmem, size = 0x20000, scoped, tag = 'input window, operand 3, single buffered']
    #allocation8 [shape = 's32[1]{0}', space=sflag, size = 0x4, scoped, tag = 'scoped memory for tpu_custom_call.1']
    #allocation9 [shape = 'u8[2048]{0}', space=vmem, size = 0x800, scoped, tag = 'input window, operand 4, single buffered']
    #allocation10 [shape = 'u8[32768]{0}', space=vmem, size = 0x8000, scoped, tag = 'output window, operand 0, single buffered']
    %12 = vsyncpa [#allocation5], 0
    %13 = vsyncpa [#allocation8], 0
    %14 = vsyncpa [#allocation6], 0
    // Predicated region
    $region2: #{tpu_custom_call.1} parent=1 // pred_check
      _
    $region3: #{tpu_custom_call.1} parent=1 // pred_check_branch
      %16 = sbr.rel (0) target = $region5
    $region4: #{tpu_custom_call.1} parent=1 // pred_region
      _
    $region5: #{tpu_custom_call.1} parent=1 // pred_fallthru
      _
    // Predicated region
    $region6: #{tpu_custom_call.1} parent=1 // pred_check
      _
    $region7: #{tpu_custom_call.1} parent=1 // pred_check_branch
      %18 = sbr.rel (0) target = $region9
    $region8: #{tpu_custom_call.1} parent=1 // pred_region
      _
    $region9: #{tpu_custom_call.1} parent=1 // pred_fallthru
      _
    // Predicated region
    $region10: #{tpu_custom_call.1} parent=1 // pred_check
      _
    $region11: #{tpu_custom_call.1} parent=1 // pred_check_branch
      %20 = sbr.rel (0) target = $region13
    $region12: #{tpu_custom_call.1} parent=1 // pred_region
      %s22 = ssub.s32 512, 512
      %23 = vsyncadd [#allocation5], %s22
      %s24 = sshll.u32 [#allocation4], 4
      %s25 = int_to_ptr.vmem [resolvable:$true] %s24
      %30 = dma.hbm_to_vmem [thread:$0]  %s2, 512, %s25, [#allocation5], 256, 256, 16
    $region13: #{tpu_custom_call.1} parent=1 // pred_fallthru
      _
    // Predicated region
    $region14: #{tpu_custom_call.1} parent=1 // pred_check
      _
    $region15: #{tpu_custom_call.1} parent=1 // pred_check_branch
      %32 = sbr.rel (0) target = $region17
    $region16: #{tpu_custom_call.1} parent=1 // pred_region
      %s34 = ssub.s32 4096, 4096
      %35 = vsyncadd [#allocation8], %s34
      %s36 = sshll.u32 [#allocation7], 4
      %s37 = int_to_ptr.vmem [resolvable:$true] %s36
      %42 = dma.hbm_to_vmem [thread:$0]  %s3, 4096, %s37, [#allocation8], 256, 256, 16
    $region17: #{tpu_custom_call.1} parent=1 // pred_fallthru
      _
    // Predicated region
    $region18: #{tpu_custom_call.1} parent=1 // pred_check
      _
    $region19: #{tpu_custom_call.1} parent=1 // pred_check_branch
      %44 = sbr.rel (0) target = $region21
    $region20: #{tpu_custom_call.1} parent=1 // pred_region
      %s46 = ssub.s32 64, 64
      %47 = vsyncadd [#allocation8], %s46
      %s49 = sshll.u32 [#allocation9], 4
      %s50 = int_to_ptr.vmem [resolvable:$true] %s49
      %52 = dma.hbm_to_vmem [thread:$0]  %s4, 64, %s50, [#allocation8]
    $region21: #{tpu_custom_call.1} parent=1 // pred_fallthru
      _
    // Predicated region
    $region22: #{tpu_custom_call.1} parent=1 // pred_check
      _
    $region23: #{tpu_custom_call.1} parent=1 // pred_check_branch
      %54 = sbr.rel (0) target = $region25
    $region24: #{tpu_custom_call.1} parent=1 // pred_region
      _
    $region25: #{tpu_custom_call.1} parent=1 // pred_fallthru
      _
    // Predicated region
    $region26: #{tpu_custom_call.1} parent=1 // pred_check
      _
    $region27: #{tpu_custom_call.1} parent=1 // pred_check_branch
      %56 = sbr.rel (0) target = $region29
    $region28: #{tpu_custom_call.1} parent=1 // pred_region
      _
    $region29: #{tpu_custom_call.1} parent=1 // pred_fallthru
      _
    // Predicated region
    $region30: #{tpu_custom_call.1} parent=1 // pred_check
      _
    $region31: #{tpu_custom_call.1} parent=1 // pred_check_branch
      %58 = sbr.rel (0) target = $region33
    $region32: #{tpu_custom_call.1} parent=1 // pred_region
      %59 = dma.done [#allocation5], 512
    $region33: #{tpu_custom_call.1} parent=1 // pred_fallthru
      _
    // Predicated region
    $region34: #{tpu_custom_call.1} parent=1 // pred_check
      _
    $region35: #{tpu_custom_call.1} parent=1 // pred_check_branch
      %61 = sbr.rel (0) target = $region37
    $region36: #{tpu_custom_call.1} parent=1 // pred_region
      %62 = dma.done [#allocation8], 4096
    $region37: #{tpu_custom_call.1} parent=1 // pred_fallthru
      _
    // Predicated region
    $region38: #{tpu_custom_call.1} parent=1 // pred_check
      _
    $region39: #{tpu_custom_call.1} parent=1 // pred_check_branch
      %64 = sbr.rel (0) target = $region41
    $region40: #{tpu_custom_call.1} parent=1 // pred_region
      %65 = dma.done [#allocation8], 64
    $region41: #{tpu_custom_call.1} parent=1 // pred_fallthru
      _
    %v67 = vld [vmem:[%s0] sm:$0xf]
    %v68 = vld [vmem:[%s0 + $0x4] sm:$0xf]
    %v69 = vld [vmem:[%s0 + $0x8] sm:$0xf]
    %v70 = vld [vmem:[%s0 + $0xc] sm:$0xf]
    %v71 = vld [vmem:[%s0 + $0x10] sm:$0xf]
    %v72 = vld [vmem:[%s0 + $0x14] sm:$0xf]
    %v73 = vld [vmem:[%s0 + $0x18] sm:$0xf]
    %v74 = vld [vmem:[%s0 + $0x1c] sm:$0xf]
    %v75 = vld [vmem:[#allocation4] sm:$0xff]
    %v76 = vld [vmem:[#allocation4 + $0x8] sm:$0xff]
    %v77 = vld [vmem:[#allocation4 + $0x10] sm:$0xff]
    %v78 = vld [vmem:[#allocation4 + $0x18] sm:$0xff]
    %v79 = vld [vmem:[#allocation9] sm:$0xf]
    %v81 = vlaneseq
    %v82 = vshrl.u32 %v81, 7
    %v83 = vsub.s32 0, %v82
    %v84 = vrot.slane %v79, %v83
    %v85 = vlaneseq
    %v86 = vshrl.u32 %v85, 7
    %v87 = vsub.s32 1, %v86
    %v88 = vrot.slane %v79, %v87
    %v89 = vlaneseq
    %v90 = vshrl.u32 %v89, 7
    %v91 = vsub.s32 2, %v90
    %v92 = vrot.slane %v79, %v91
    %v93 = vlaneseq
    %v94 = vshrl.u32 %v93, 7
    %v95 = vsub.s32 3, %v94
    %v96 = vrot.slane %v79, %v95
    %v109 = vunpack.c.l.b16 %v67
    %v110 = vunpack.c.l.b16 %v68
    %v111 = vunpack.c.l.b16 %v69
    %v112 = vunpack.c.l.b16 %v70
    %v113 = vunpack.c.l.b16 %v71
    %v114 = vunpack.c.l.b16 %v72
    %v115 = vunpack.c.l.b16 %v73
    %v116 = vunpack.c.l.b16 %v74
    %v117 = vpack.c.b16 %v110, %v109
    %v118 = vpack.c.b16 %v112, %v111
    %v119 = vpack.c.b16 %v114, %v113
    %v120 = vpack.c.b16 %v116, %v115
    %v125 = vunpack.c.l.b16 %v75
    %v126 = vunpack.c.h.b16 %v75
    %v127 = vunpack.c.l.b16 %v76
    %v128 = vunpack.c.h.b16 %v76
    %v129 = vunpack.c.l.b16 %v77
    %v130 = vunpack.c.h.b16 %v77
    %v131 = vunpack.c.l.b16 %v78
    %v132 = vunpack.c.h.b16 %v78
    %v133 = vpack.c.b16 %v129, %v125
    %v134 = vpack.c.b16 %v130, %v126
    %v135 = vpack.c.b16 %v131, %v127
    %v136 = vpack.c.b16 %v132, %v128
    %vm141 = vcmask 130048
    %v143 = vsel %vm141, %v117, 0
    %v146 = vsel %vm141, %v118, 0
    %v149 = vsel %vm141, %v119, 0
    %v152 = vsel %vm141, %v120, 0
    %154 = vmatprep.subr.bf16.mxu0 %v134
    %155 = vmatpush1.bf16.msra.mxu0 %v133
    %156 = vmatprep.subr.bf16.mxu0 0
    %157 = vmatpush1.bf16.msra.mxu0 0
    %158 = vmatprep.subr.bf16.mxu0 0
    %159 = vmatpush1.bf16.msra.mxu0 0
    %160 = vmatprep.subr.bf16.mxu0 0
    %161 = vmatpush1.bf16.msra.mxu0 0
    %162 = vmatprep.subr.bf16.mxu0 0
    %163 = vmatpush1.bf16.msra.mxu0 0
    %164 = vmatprep.subr.bf16.mxu0 0
    %165 = vmatpush1.bf16.msra.mxu0 0
    %166 = vmatprep.subr.bf16.mxu0 0
    %167 = vmatpush1.bf16.msra.mxu0 0
    %168 = vmatprep.subr.bf16.mxu0 0
    %169 = vmatpush1.bf16.msra.mxu0 0
    %170 = vmatprep.subr.bf16.mxu0 0
    %171 = vmatpush1.bf16.msra.mxu0 0
    %172 = vmatprep.subr.bf16.mxu0 0
    %173 = vmatpush1.bf16.msra.mxu0 0
    %174 = vmatprep.subr.bf16.mxu0 0
    %175 = vmatpush1.bf16.msra.mxu0 0
    %176 = vmatprep.subr.bf16.mxu0 0
    %177 = vmatpush1.bf16.msra.mxu0 0
    %178 = vmatprep.subr.bf16.mxu0 0
    %179 = vmatpush1.bf16.msra.mxu0 0
    %180 = vmatprep.subr.bf16.mxu0 0
    %181 = vmatpush1.bf16.msra.mxu0 0
    %182 = vmatprep.subr.bf16.mxu0 0
    %183 = vmatpush1.bf16.msra.mxu0 0
    %184 = vmatprep.subr.bf16.mxu0 0
    %185 = vmatpush1.bf16.msra.mxu0 0
    %186 = vmatprep.mubr.bf16.mxu0 0
    %187 = vmatmul.mubr.bf16.gmra.mrb[0].mxu0 %v143
    %v188 = vpop.f32.mrb[0].mxu0
    %v189 = vadd.f32 %v84, %v188
    %v190 = vpop.f32.mrb[0].mxu0
    %v191 = vadd.f32 %v88, %v190
    %v192 = vpop.f32.mrb[0].mxu0
    %v193 = vadd.f32 %v84, %v192
    %v194 = vpop.f32.mrb[0].mxu0
    %v195 = vadd.f32 %v88, %v194
    %196 = vmatprep.mubr.bf16.mxu0 0
    %197 = vmatmul.mubr.bf16.gmra.mrb[0].mxu0 %v146
    %v198 = vpop.f32.mrb[0].mxu0
    %v199 = vadd.f32 %v84, %v198
    %v200 = vpop.f32.mrb[0].mxu0
    %v201 = vadd.f32 %v88, %v200
    %v202 = vpop.f32.mrb[0].mxu0
    %v203 = vadd.f32 %v84, %v202
    %v204 = vpop.f32.mrb[0].mxu0
    %v205 = vadd.f32 %v88, %v204
    %206 = vmatprep.mubr.bf16.mxu0 0
    %207 = vmatmul.mubr.bf16.gmra.mrb[0].mxu0 %v149
    %v208 = vpop.f32.mrb[0].mxu0
    %v209 = vadd.f32 %v84, %v208
    %v210 = vpop.f32.mrb[0].mxu0
    %v211 = vadd.f32 %v88, %v210
    %v212 = vpop.f32.mrb[0].mxu0
    %v213 = vadd.f32 %v84, %v212
    %v214 = vpop.f32.mrb[0].mxu0
    %v215 = vadd.f32 %v88, %v214
    %216 = vmatprep.mubr.bf16.mxu0 0
    %217 = vmatmul.mubr.bf16.gmra.mrb[0].mxu0 %v152
    %v218 = vpop.f32.mrb[0].mxu0
    %v219 = vadd.f32 %v84, %v218
    %v220 = vpop.f32.mrb[0].mxu0
    %v221 = vadd.f32 %v88, %v220
    %v222 = vpop.f32.mrb[0].mxu0
    %v223 = vadd.f32 %v84, %v222
    %v224 = vpop.f32.mrb[0].mxu0
    %v225 = vadd.f32 %v88, %v224
    %226 = vdwg.mxu0
    %227 = vmatprep.subr.bf16.mxu0 %v136
    %228 = vmatpush1.bf16.msra.mxu0 %v135
    %229 = vmatprep.subr.bf16.mxu0 0
    %230 = vmatpush1.bf16.msra.mxu0 0
    %231 = vmatprep.subr.bf16.mxu0 0
    %232 = vmatpush1.bf16.msra.mxu0 0
    %233 = vmatprep.subr.bf16.mxu0 0
    %234 = vmatpush1.bf16.msra.mxu0 0
    %235 = vmatprep.subr.bf16.mxu0 0
    %236 = vmatpush1.bf16.msra.mxu0 0
    %237 = vmatprep.subr.bf16.mxu0 0
    %238 = vmatpush1.bf16.msra.mxu0 0
    %239 = vmatprep.subr.bf16.mxu0 0
    %240 = vmatpush1.bf16.msra.mxu0 0
    %241 = vmatprep.subr.bf16.mxu0 0
    %242 = vmatpush1.bf16.msra.mxu0 0
    %243 = vmatprep.subr.bf16.mxu0 0
    %244 = vmatpush1.bf16.msra.mxu0 0
    %245 = vmatprep.subr.bf16.mxu0 0
    %246 = vmatpush1.bf16.msra.mxu0 0
    %247 = vmatprep.subr.bf16.mxu0 0
    %248 = vmatpush1.bf16.msra.mxu0 0
    %249 = vmatprep.subr.bf16.mxu0 0
    %250 = vmatpush1.bf16.msra.mxu0 0
    %251 = vmatprep.subr.bf16.mxu0 0
    %252 = vmatpush1.bf16.msra.mxu0 0
    %253 = vmatprep.subr.bf16.mxu0 0
    %254 = vmatpush1.bf16.msra.mxu0 0
    %255 = vmatprep.subr.bf16.mxu0 0
    %256 = vmatpush1.bf16.msra.mxu0 0
    %257 = vmatprep.subr.bf16.mxu0 0
    %258 = vmatpush1.bf16.msra.mxu0 0
    %259 = vmatprep.mubr.bf16.mxu0 0
    %260 = vmatmul.mubr.bf16.gmra.mrb[0].mxu0 %v143
    %v261 = vpop.f32.mrb[0].mxu0
    %v262 = vadd.f32 %v92, %v261
    %v263 = vpop.f32.mrb[0].mxu0
    %v264 = vadd.f32 %v96, %v263
    %v265 = vpop.f32.mrb[0].mxu0
    %v266 = vadd.f32 %v92, %v265
    %v267 = vpop.f32.mrb[0].mxu0
    %v268 = vadd.f32 %v96, %v267
    %269 = vmatprep.mubr.bf16.mxu0 0
    %270 = vmatmul.mubr.bf16.gmra.mrb[0].mxu0 %v146
    %v271 = vpop.f32.mrb[0].mxu0
    %v272 = vadd.f32 %v92, %v271
    %v273 = vpop.f32.mrb[0].mxu0
    %v274 = vadd.f32 %v96, %v273
    %v275 = vpop.f32.mrb[0].mxu0
    %v276 = vadd.f32 %v92, %v275
    %v277 = vpop.f32.mrb[0].mxu0
    %v278 = vadd.f32 %v96, %v277
    %279 = vmatprep.mubr.bf16.mxu0 0
    %280 = vmatmul.mubr.bf16.gmra.mrb[0].mxu0 %v149
    %v281 = vpop.f32.mrb[0].mxu0
    %v282 = vadd.f32 %v92, %v281
    %v283 = vpop.f32.mrb[0].mxu0
    %v284 = vadd.f32 %v96, %v283
    %v285 = vpop.f32.mrb[0].mxu0
    %v286 = vadd.f32 %v92, %v285
    %v287 = vpop.f32.mrb[0].mxu0
    %v288 = vadd.f32 %v96, %v287
    %289 = vmatprep.mubr.bf16.mxu0 0
    %290 = vmatmul.mubr.bf16.gmra.mrb[0].mxu0 %v152
    %v291 = vpop.f32.mrb[0].mxu0
    %v292 = vadd.f32 %v92, %v291
    %v293 = vpop.f32.mrb[0].mxu0
    %v294 = vadd.f32 %v96, %v293
    %v295 = vpop.f32.mrb[0].mxu0
    %v296 = vadd.f32 %v92, %v295
    %v297 = vpop.f32.mrb[0].mxu0
    %v298 = vadd.f32 %v96, %v297
    %299 = vdwg.mxu0
    %v300 = vpack.c.bf16 %v193, %v189
    %v301 = vpack.c.bf16 %v195, %v191
    %v302 = vpack.c.bf16 %v266, %v262
    %v303 = vpack.c.bf16 %v268, %v264
    %v304 = vpack.c.bf16 %v203, %v199
    %v305 = vpack.c.bf16 %v205, %v201
    %v306 = vpack.c.bf16 %v276, %v272
    %v307 = vpack.c.bf16 %v278, %v274
    %v308 = vpack.c.bf16 %v213, %v209
    %v309 = vpack.c.bf16 %v215, %v211
    %v310 = vpack.c.bf16 %v286, %v282
    %v311 = vpack.c.bf16 %v288, %v284
    %v312 = vpack.c.bf16 %v223, %v219
    %v313 = vpack.c.bf16 %v225, %v221
    %v314 = vpack.c.bf16 %v296, %v292
    %v315 = vpack.c.bf16 %v298, %v294
    %v332 = vunpack.c.l.b16 %v300
    %v333 = vunpack.c.l.b16 %v301
    %v334 = vunpack.c.l.b16 %v302
    %v335 = vunpack.c.l.b16 %v303
    %v336 = vunpack.c.h.b16 %v300
    %v337 = vunpack.c.h.b16 %v301
    %v338 = vunpack.c.h.b16 %v302
    %v339 = vunpack.c.h.b16 %v303
    %v340 = vunpack.c.l.b16 %v304
    %v341 = vunpack.c.l.b16 %v305
    %v342 = vunpack.c.l.b16 %v306
    %v343 = vunpack.c.l.b16 %v307
    %v344 = vunpack.c.h.b16 %v304
    %v345 = vunpack.c.h.b16 %v305
    %v346 = vunpack.c.h.b16 %v306
    %v347 = vunpack.c.h.b16 %v307
    %v348 = vunpack.c.l.b16 %v308
    %v349 = vunpack.c.l.b16 %v309
    %v350 = vunpack.c.l.b16 %v310
    %v351 = vunpack.c.l.b16 %v311
    %v352 = vunpack.c.h.b16 %v308
    %v353 = vunpack.c.h.b16 %v309
    %v354 = vunpack.c.h.b16 %v310
    %v355 = vunpack.c.h.b16 %v311
    %v356 = vunpack.c.l.b16 %v312
    %v357 = vunpack.c.l.b16 %v313
    %v358 = vunpack.c.l.b16 %v314
    %v359 = vunpack.c.l.b16 %v315
    %v360 = vunpack.c.h.b16 %v312
    %v361 = vunpack.c.h.b16 %v313
    %v362 = vunpack.c.h.b16 %v314
    %v363 = vunpack.c.h.b16 %v315
    %v364 = vpack.c.b16 %v333, %v332
    %v365 = vpack.c.b16 %v335, %v334
    %v366 = vpack.c.b16 %v337, %v336
    %v367 = vpack.c.b16 %v339, %v338
    %v368 = vpack.c.b16 %v341, %v340
    %v369 = vpack.c.b16 %v343, %v342
    %v370 = vpack.c.b16 %v345, %v344
    %v371 = vpack.c.b16 %v347, %v346
    %v372 = vpack.c.b16 %v349, %v348
    %v373 = vpack.c.b16 %v351, %v350
    %v374 = vpack.c.b16 %v353, %v352
    %v375 = vpack.c.b16 %v355, %v354
    %v376 = vpack.c.b16 %v357, %v356
    %v377 = vpack.c.b16 %v359, %v358
    %v378 = vpack.c.b16 %v361, %v360
    %v379 = vpack.c.b16 %v363, %v362
    %396 = vst [vmem:[#allocation2] sm:$0xff] %v364
    %397 = vst [vmem:[#allocation2 + $0x8] sm:$0xff] %v365
    %398 = vst [vmem:[#allocation2 + $0x10] sm:$0xff] %v366
    %399 = vst [vmem:[#allocation2 + $0x18] sm:$0xff] %v367
    %400 = vst [vmem:[#allocation2 + $0x20] sm:$0xff] %v368
    %401 = vst [vmem:[#allocation2 + $0x28] sm:$0xff] %v369
    %402 = vst [vmem:[#allocation2 + $0x30] sm:$0xff] %v370
    %403 = vst [vmem:[#allocation2 + $0x38] sm:$0xff] %v371
    %404 = vst [vmem:[#allocation2 + $0x40] sm:$0xff] %v372
    %405 = vst [vmem:[#allocation2 + $0x48] sm:$0xff] %v373
    %406 = vst [vmem:[#allocation2 + $0x50] sm:$0xff] %v374
    %407 = vst [vmem:[#allocation2 + $0x58] sm:$0xff] %v375
    %408 = vst [vmem:[#allocation2 + $0x60] sm:$0xff] %v376
    %409 = vst [vmem:[#allocation2 + $0x68] sm:$0xff] %v377
    %410 = vst [vmem:[#allocation2 + $0x70] sm:$0xff] %v378
    %411 = vst [vmem:[#allocation2 + $0x78] sm:$0xff] %v379
    %v412 = vld [vmem:[#allocation7] sm:$0xff]
    %v413 = vld [vmem:[#allocation7 + $0x8] sm:$0xff]
    %v414 = vld [vmem:[#allocation7 + $0x10] sm:$0xff]
    %v415 = vld [vmem:[#allocation7 + $0x18] sm:$0xff]
    %v416 = vld [vmem:[#allocation7 + $0x20] sm:$0xff]
    %v417 = vld [vmem:[#allocation7 + $0x28] sm:$0xff]
    %v418 = vld [vmem:[#allocation7 + $0x30] sm:$0xff]
    %v419 = vld [vmem:[#allocation7 + $0x38] sm:$0xff]
    %v420 = vld [vmem:[#allocation7 + $0x40] sm:$0xff]
    %v421 = vld [vmem:[#allocation7 + $0x48] sm:$0xff]
    %v422 = vld [vmem:[#allocation7 + $0x50] sm:$0xff]
    %v423 = vld [vmem:[#allocation7 + $0x58] sm:$0xff]
    %v424 = vld [vmem:[#allocation7 + $0x60] sm:$0xff]
    %v425 = vld [vmem:[#allocation7 + $0x68] sm:$0xff]
    %v426 = vld [vmem:[#allocation7 + $0x70] sm:$0xff]
    %v427 = vld [vmem:[#allocation7 + $0x78] sm:$0xff]
    %v428 = vld [vmem:[#allocation7 + $0x80] sm:$0xff]
    %v429 = vld [vmem:[#allocation7 + $0x88] sm:$0xff]
    %v430 = vld [vmem:[#allocation7 + $0x90] sm:$0xff]
    %v431 = vld [vmem:[#allocation7 + $0x98] sm:$0xff]
    %v432 = vld [vmem:[#allocation7 + $0xa0] sm:$0xff]
    %v433 = vld [vmem:[#allocation7 + $0xa8] sm:$0xff]
    %v434 = vld [vmem:[#allocation7 + $0xb0] sm:$0xff]
    %v435 = vld [vmem:[#allocation7 + $0xb8] sm:$0xff]
    %v436 = vld [vmem:[#allocation7 + $0xc0] sm:$0xff]
    %v437 = vld [vmem:[#allocation7 + $0xc8] sm:$0xff]
    %v438 = vld [vmem:[#allocation7 + $0xd0] sm:$0xff]
    %v439 = vld [vmem:[#allocation7 + $0xd8] sm:$0xff]
    %v440 = vld [vmem:[#allocation7 + $0xe0] sm:$0xff]
    %v441 = vld [vmem:[#allocation7 + $0xe8] sm:$0xff]
    %v442 = vld [vmem:[#allocation7 + $0xf0] sm:$0xff]
    %v443 = vld [vmem:[#allocation7 + $0xf8] sm:$0xff]
    %v444 = vld [vmem:[%s1] sm:$0xff]
    %v445 = vld [vmem:[#allocation2] sm:$0xff]
    %v446 = vld [vmem:[#allocation2 + $0x8] sm:$0xff]
    %v447 = vunpack.c.l.bf16 %v445
    %v448 = vunpack.c.h.bf16 %v445
    %v449 = vunpack.c.l.bf16 %v446
    %v450 = vunpack.c.h.bf16 %v446
    %v483 = vunpack.c.l.b16 %v412
    %v484 = vunpack.c.h.b16 %v412
    %v485 = vunpack.c.l.b16 %v413
    %v486 = vunpack.c.h.b16 %v413
    %v487 = vunpack.c.l.b16 %v414
    %v488 = vunpack.c.h.b16 %v414
    %v489 = vunpack.c.l.b16 %v415
    %v490 = vunpack.c.h.b16 %v415
    %v491 = vunpack.c.l.b16 %v416
    %v492 = vunpack.c.h.b16 %v416
    %v493 = vunpack.c.l.b16 %v417
    %v494 = vunpack.c.h.b16 %v417
    %v495 = vunpack.c.l.b16 %v418
    %v496 = vunpack.c.h.b16 %v418
    %v497 = vunpack.c.l.b16 %v419
    %v498 = vunpack.c.h.b16 %v419
    %v499 = vunpack.c.l.b16 %v420
    %v500 = vunpack.c.h.b16 %v420
    %v501 = vunpack.c.l.b16 %v421
    %v502 = vunpack.c.h.b16 %v421
    %v503 = vunpack.c.l.b16 %v422
    %v504 = vunpack.c.h.b16 %v422
    %v505 = vunpack.c.l.b16 %v423
    %v506 = vunpack.c.h.b16 %v423
    %v507 = vunpack.c.l.b16 %v424
    %v508 = vunpack.c.h.b16 %v424
    %v509 = vunpack.c.l.b16 %v425
    %v510 = vunpack.c.h.b16 %v425
    %v511 = vunpack.c.l.b16 %v426
    %v512 = vunpack.c.h.b16 %v426
    %v513 = vunpack.c.l.b16 %v427
    %v514 = vunpack.c.h.b16 %v427
    %v515 = vunpack.c.l.b16 %v428
    %v516 = vunpack.c.h.b16 %v428
    %v517 = vunpack.c.l.b16 %v429
    %v518 = vunpack.c.h.b16 %v429
    %v519 = vunpack.c.l.b16 %v430
    %v520 = vunpack.c.h.b16 %v430
    %v521 = vunpack.c.l.b16 %v431
    %v522 = vunpack.c.h.b16 %v431
    %v523 = vunpack.c.l.b16 %v432
    %v524 = vunpack.c.h.b16 %v432
    %v525 = vunpack.c.l.b16 %v433
    %v526 = vunpack.c.h.b16 %v433
    %v527 = vunpack.c.l.b16 %v434
    %v528 = vunpack.c.h.b16 %v434
    %v529 = vunpack.c.l.b16 %v435
    %v530 = vunpack.c.h.b16 %v435
    %v531 = vunpack.c.l.b16 %v436
    %v532 = vunpack.c.h.b16 %v436
    %v533 = vunpack.c.l.b16 %v437
    %v534 = vunpack.c.h.b16 %v437
    %v535 = vunpack.c.l.b16 %v438
    %v536 = vunpack.c.h.b16 %v438
    %v537 = vunpack.c.l.b16 %v439
    %v538 = vunpack.c.h.b16 %v439
    %v539 = vunpack.c.l.b16 %v440
    %v540 = vunpack.c.h.b16 %v440
    %v541 = vunpack.c.l.b16 %v441
    %v542 = vunpack.c.h.b16 %v441
    %v543 = vunpack.c.l.b16 %v442
    %v544 = vunpack.c.h.b16 %v442
    %v545 = vunpack.c.l.b16 %v443
    %v546 = vunpack.c.h.b16 %v443
    %v547 = vpack.c.b16 %v487, %v483
    %v548 = vpack.c.b16 %v488, %v484
    %v549 = vpack.c.b16 %v489, %v485
    %v550 = vpack.c.b16 %v490, %v486
    %v551 = vpack.c.b16 %v495, %v491
    %v552 = vpack.c.b16 %v496, %v492
    %v553 = vpack.c.b16 %v497, %v493
    %v554 = vpack.c.b16 %v498, %v494
    %v555 = vpack.c.b16 %v503, %v499
    %v556 = vpack.c.b16 %v504, %v500
    %v557 = vpack.c.b16 %v505, %v501
    %v558 = vpack.c.b16 %v506, %v502
    %v559 = vpack.c.b16 %v511, %v507
    %v560 = vpack.c.b16 %v512, %v508
    %v561 = vpack.c.b16 %v513, %v509
    %v562 = vpack.c.b16 %v514, %v510
    %v563 = vpack.c.b16 %v519, %v515
    %v564 = vpack.c.b16 %v520, %v516
    %v565 = vpack.c.b16 %v521, %v517
    %v566 = vpack.c.b16 %v522, %v518
    %v567 = vpack.c.b16 %v527, %v523
    %v568 = vpack.c.b16 %v528, %v524
    %v569 = vpack.c.b16 %v529, %v525
    %v570 = vpack.c.b16 %v530, %v526
    %v571 = vpack.c.b16 %v535, %v531
    %v572 = vpack.c.b16 %v536, %v532
    %v573 = vpack.c.b16 %v537, %v533
    %v574 = vpack.c.b16 %v538, %v534
    %v575 = vpack.c.b16 %v543, %v539
    %v576 = vpack.c.b16 %v544, %v540
    %v577 = vpack.c.b16 %v545, %v541
    %v578 = vpack.c.b16 %v546, %v542
    %611 = vmatprep.subr.bf16.mxu0 %v548
    %612 = vmatpush1.bf16.msra.mxu0 %v547
    %613 = vmatprep.subr.bf16.mxu0 %v552
    %614 = vmatpush1.bf16.msra.mxu0 %v551
    %615 = vmatprep.subr.bf16.mxu0 %v556
    %616 = vmatpush1.bf16.msra.mxu0 %v555
    %617 = vmatprep.subr.bf16.mxu0 %v560
    %618 = vmatpush1.bf16.msra.mxu0 %v559
    %619 = vmatprep.subr.bf16.mxu0 %v564
    %620 = vmatpush1.bf16.msra.mxu0 %v563
    %621 = vmatprep.subr.bf16.mxu0 %v568
    %622 = vmatpush1.bf16.msra.mxu0 %v567
    %623 = vmatprep.subr.bf16.mxu0 %v572
    %624 = vmatpush1.bf16.msra.mxu0 %v571
    %625 = vmatprep.subr.bf16.mxu0 %v576
    %626 = vmatpush1.bf16.msra.mxu0 %v575
    %627 = vmatprep.subr.bf16.mxu0 0
    %628 = vmatpush1.bf16.msra.mxu0 0
    %629 = vmatprep.subr.bf16.mxu0 0
    %630 = vmatpush1.bf16.msra.mxu0 0
    %631 = vmatprep.subr.bf16.mxu0 0
    %632 = vmatpush1.bf16.msra.mxu0 0
    %633 = vmatprep.subr.bf16.mxu0 0
    %634 = vmatpush1.bf16.msra.mxu0 0
    %635 = vmatprep.subr.bf16.mxu0 0
    %636 = vmatpush1.bf16.msra.mxu0 0
    %637 = vmatprep.subr.bf16.mxu0 0
    %638 = vmatpush1.bf16.msra.mxu0 0
    %639 = vmatprep.subr.bf16.mxu0 0
    %640 = vmatpush1.bf16.msra.mxu0 0
    %641 = vmatprep.subr.bf16.mxu0 0
    %642 = vmatpush1.bf16.msra.mxu0 0
    %643 = vmatprep.mubr.bf16.mxu0 0
    %644 = vmatmul.mubr.bf16.gmra.mrb[0].mxu0 0
    %v645 = vpop.f32.mrb[0].mxu0
    %v646 = vadd.f32 0.0, %v645
    %v647 = vpop.f32.mrb[0].mxu0
    %v648 = vadd.f32 0.0, %v647
    %v649 = vpop.f32.mrb[0].mxu0
    %v650 = vpop.f32.mrb[0].mxu0
    %651 = vdwg.mxu0
    %652 = vmatprep.subr.bf16.mxu0 %v550
    %653 = vmatpush1.bf16.msra.mxu0 %v549
    %654 = vmatprep.subr.bf16.mxu0 %v554
    %655 = vmatpush1.bf16.msra.mxu0 %v553
    %656 = vmatprep.subr.bf16.mxu0 %v558
    %657 = vmatpush1.bf16.msra.mxu0 %v557
    %658 = vmatprep.subr.bf16.mxu0 %v562
    %659 = vmatpush1.bf16.msra.mxu0 %v561
    %660 = vmatprep.subr.bf16.mxu0 %v566
    %661 = vmatpush1.bf16.msra.mxu0 %v565
    %662 = vmatprep.subr.bf16.mxu0 %v570
    %663 = vmatpush1.bf16.msra.mxu0 %v569
    %664 = vmatprep.subr.bf16.mxu0 %v574
    %665 = vmatpush1.bf16.msra.mxu0 %v573
    %666 = vmatprep.subr.bf16.mxu0 %v578
    %667 = vmatpush1.bf16.msra.mxu0 %v577
    %668 = vmatprep.subr.bf16.mxu0 0
    %669 = vmatpush1.bf16.msra.mxu0 0
    %670 = vmatprep.subr.bf16.mxu0 0
    %671 = vmatpush1.bf16.msra.mxu0 0
    %672 = vmatprep.subr.bf16.mxu0 0
    %673 = vmatpush1.bf16.msra.mxu0 0
    %674 = vmatprep.subr.bf16.mxu0 0
    %675 = vmatpush1.bf16.msra.mxu0 0
    %676 = vmatprep.subr.bf16.mxu0 0
    %677 = vmatpush1.bf16.msra.mxu0 0
    %678 = vmatprep.subr.bf16.mxu0 0
    %679 = vmatpush1.bf16.msra.mxu0 0
    %680 = vmatprep.subr.bf16.mxu0 0
    %681 = vmatpush1.bf16.msra.mxu0 0
    %682 = vmatprep.subr.bf16.mxu0 0
    %683 = vmatpush1.bf16.msra.mxu0 0
    %684 = vmatprep.mubr.bf16.mxu0 0
    %685 = vmatmul.mubr.bf16.gmra.mrb[0].mxu0 0
    %v686 = vpop.f32.mrb[0].mxu0
    %v687 = vadd.f32 0.0, %v686
    %v688 = vpop.f32.mrb[0].mxu0
    %v689 = vadd.f32 0.0, %v688
    %v690 = vpop.f32.mrb[0].mxu0
    %v691 = vpop.f32.mrb[0].mxu0
    %692 = vdwg.mxu0
    %v693 = vadd.f32 %v447, %v646
    %v694 = vadd.f32 %v448, %v648
    %v695 = vadd.f32 %v449, %v687
    %v696 = vadd.f32 %v450, %v689
    %v697 = vmul.f32 %v693, 0.5
    %v698 = vmul.f32 %v694, 0.5
    %v699 = vmul.f32 %v695, 0.5
    %v700 = vtanh.pop %v697
    %v701 = vtanh.pop %v698
    %v702 = vtanh.pop %v699
    %v703 = vmul.f32 %v700, 0.5
    %v704 = vmul.f32 %v701, 0.5
    %v705 = vmul.f32 %v702, 0.5
    %v706 = vadd.f32 %v703, 0.5
    %v707 = vadd.f32 %v704, 0.5
    %v708 = vadd.f32 %v705, 0.5
    %v709 = vtanh.pop %v696
    %v710 = vmul.f32 %v707, 0.0
    %v711 = vmul.f32 %v706, %v709
    %v712 = vadd.f32 %v710, %v711
    %v713 = vtanh.pop %v712
    %v714 = vmul.f32 %v708, %v713
    %vm715 = vcmp.gt.s32.totalorder %v444, 0
    %v716 = vsel %vm715, 1, 0
    %717 = vset.pattern.permute.xlu0 0
    %718 = vperm.xlu0 %717, %v716
    %v719 = vpop.permute.xlu0 %718
    %vm720 = vcmp.eq.s32.totalorder %v719, 1
    %v721 = vsel %vm720, %v714, 0.0
    %v722 = vpack.c.bf16 %v721, %v721
    %723 = vst [vmem:[#allocation3] sm:$0xf] %v722
    %s724 = scalar_lea.vmem [#allocation2], 16
    %v725 = vld [vmem:[%s724] sm:$0xff]
    %v726 = vld [vmem:[%s724 + $0x8] sm:$0xff]
    %v727 = vunpack.c.l.bf16 %v725
    %v728 = vunpack.c.h.bf16 %v725
    %v729 = vunpack.c.l.bf16 %v726
    %v730 = vunpack.c.h.bf16 %v726
    %v731 = vpack.c.bf16 %v714, %v714
    %732 = vmatprep.subr.bf16.mxu0 %v548
    %733 = vmatpush1.bf16.msra.mxu0 %v547
    %734 = vmatprep.subr.bf16.mxu0 %v552
    %735 = vmatpush1.bf16.msra.mxu0 %v551
    %736 = vmatprep.subr.bf16.mxu0 %v556
    %737 = vmatpush1.bf16.msra.mxu0 %v555
    %738 = vmatprep.subr.bf16.mxu0 %v560
    %739 = vmatpush1.bf16.msra.mxu0 %v559
    %740 = vmatprep.subr.bf16.mxu0 %v564
    %741 = vmatpush1.bf16.msra.mxu0 %v563
    %742 = vmatprep.subr.bf16.mxu0 %v568
    %743 = vmatpush1.bf16.msra.mxu0 %v567
    %744 = vmatprep.subr.bf16.mxu0 %v572
    %745 = vmatpush1.bf16.msra.mxu0 %v571
    %746 = vmatprep.subr.bf16.mxu0 %v576
    %747 = vmatpush1.bf16.msra.mxu0 %v575
    %748 = vmatprep.subr.bf16.mxu0 0
    %749 = vmatpush1.bf16.msra.mxu0 0
    %750 = vmatprep.subr.bf16.mxu0 0
    %751 = vmatpush1.bf16.msra.mxu0 0
    %752 = vmatprep.subr.bf16.mxu0 0
    %753 = vmatpush1.bf16.msra.mxu0 0
    %754 = vmatprep.subr.bf16.mxu0 0
    %755 = vmatpush1.bf16.msra.mxu0 0
    %756 = vmatprep.subr.bf16.mxu0 0
    %757 = vmatpush1.bf16.msra.mxu0 0
    %758 = vmatprep.subr.bf16.mxu0 0
    %759 = vmatpush1.bf16.msra.mxu0 0
    %760 = vmatprep.subr.bf16.mxu0 0
    %761 = vmatpush1.bf16.msra.mxu0 0
    %762 = vmatprep.subr.bf16.mxu0 0
    %763 = vmatpush1.bf16.msra.mxu0 0
    %764 = vmatprep.mubr.bf16.mxu0 0
    %765 = vmatmul.mubr.bf16.gmra.mrb[0].mxu0 %v731
    %v766 = vpop.f32.mrb[0].mxu0
    %v767 = vadd.f32 0.0, %v766
    %v768 = vpop.f32.mrb[0].mxu0
    %v769 = vadd.f32 0.0, %v768
    %v770 = vpop.f32.mrb[0].mxu0
    %v771 = vpop.f32.mrb[0].mxu0
    %772 = vdwg.mxu0
    %773 = vmatprep.subr.bf16.mxu0 %v550
    %774 = vmatpush1.bf16.msra.mxu0 %v549
    %775 = vmatprep.subr.bf16.mxu0 %v554
    %776 = vmatpush1.bf16.msra.mxu0 %v553
    %777 = vmatprep.subr.bf16.mxu0 %v558
    %778 = vmatpush1.bf16.msra.mxu0 %v557
    %779 = vmatprep.subr.bf16.mxu0 %v562
    %780 = vmatpush1.bf16.msra.mxu0 %v561
    %781 = vmatprep.subr.bf16.mxu0 %v566
    %782 = vmatpush1.bf16.msra.mxu0 %v565
    %783 = vmatprep.subr.bf16.mxu0 %v570
    %784 = vmatpush1.bf16.msra.mxu0 %v569
    %785 = vmatprep.subr.bf16.mxu0 %v574
    %786 = vmatpush1.bf16.msra.mxu0 %v573
    %787 = vmatprep.subr.bf16.mxu0 %v578
    %788 = vmatpush1.bf16.msra.mxu0 %v577
    %789 = vmatprep.subr.bf16.mxu0 0
    %790 = vmatpush1.bf16.msra.mxu0 0
    %791 = vmatprep.subr.bf16.mxu0 0
    %792 = vmatpush1.bf16.msra.mxu0 0
    %793 = vmatprep.subr.bf16.mxu0 0
    %794 = vmatpush1.bf16.msra.mxu0 0
    %795 = vmatprep.subr.bf16.mxu0 0
    %796 = vmatpush1.bf16.msra.mxu0 0
    %797 = vmatprep.subr.bf16.mxu0 0
    %798 = vmatpush1.bf16.msra.mxu0 0
    %799 = vmatprep.subr.bf16.mxu0 0
    %800 = vmatpush1.bf16.msra.mxu0 0
    %801 = vmatprep.subr.bf16.mxu0 0
    %802 = vmatpush1.bf16.msra.mxu0 0
    %803 = vmatprep.subr.bf16.mxu0 0
    %804 = vmatpush1.bf16.msra.mxu0 0
    %805 = vmatprep.mubr.bf16.mxu0 0
    %806 = vmatmul.mubr.bf16.gmra.mrb[0].mxu0 %v731
    %v807 = vpop.f32.mrb[0].mxu0
    %v808 = vadd.f32 0.0, %v807
    %v809 = vpop.f32.mrb[0].mxu0
    %v810 = vadd.f32 0.0, %v809
    %v811 = vpop.f32.mrb[0].mxu0
    %v812 = vpop.f32.mrb[0].mxu0
    %813 = vdwg.mxu0
    %v814 = vadd.f32 %v727, %v767
    %v815 = vadd.f32 %v728, %v769
    %v816 = vadd.f32 %v729, %v808
    %v817 = vadd.f32 %v730, %v810
    %v818 = vmul.f32 %v814, 0.5
    %v819 = vmul.f32 %v815, 0.5
    %v820 = vmul.f32 %v816, 0.5
    %v821 = vtanh.pop %v818
    %v822 = vtanh.pop %v819
    %v823 = vtanh.pop %v820
    %v824 = vmul.f32 %v821, 0.5
    %v825 = vmul.f32 %v822, 0.5
    %v826 = vmul.f32 %v823, 0.5
    %v827 = vadd.f32 %v824, 0.5
    %v828 = vadd.f32 %v825, 0.5
    %v829 = vadd.f32 %v826, 0.5
    %v830 = vtanh.pop %v817
    %v831 = vmul.f32 %v828, %v712
    %v832 = vmul.f32 %v827, %v830
    %v833 = vadd.f32 %v831, %v832
    %v834 = vtanh.pop %v833
    %v835 = vmul.f32 %v829, %v834
    %vm836 = vcmp.gt.s32.totalorder %v444, 1
    %v837 = vsel %vm836, 1, 0
    %838 = vset.pattern.permute.xlu0 0
    %839 = vperm.xlu0 %838, %v837
    %v840 = vpop.permute.xlu0 %839
    %vm841 = vcmp.eq.s32.totalorder %v840, 1
    %v842 = vsel %vm841, %v835, 0.0
    %v843 = vpack.c.bf16 %v842, %v842
    %s844 = scalar_lea.vmem [#allocation3], 4
    %845 = vst [vmem:[%s844] sm:$0xf] %v843
    %s846 = scalar_lea.vmem [#allocation2], 32
    %v847 = vld [vmem:[%s846] sm:$0xff]
    %v848 = vld [vmem:[%s846 + $0x8] sm:$0xff]
    %v849 = vunpack.c.l.bf16 %v847
    %v850 = vunpack.c.h.bf16 %v847
    %v851 = vunpack.c.l.bf16 %v848
    %v852 = vunpack.c.h.bf16 %v848
    %v853 = vpack.c.bf16 %v835, %v835
    %854 = vmatprep.subr.bf16.mxu0 %v548
    %855 = vmatpush1.bf16.msra.mxu0 %v547
    %856 = vmatprep.subr.bf16.mxu0 %v552
    %857 = vmatpush1.bf16.msra.mxu0 %v551
    %858 = vmatprep.subr.bf16.mxu0 %v556
    %859 = vmatpush1.bf16.msra.mxu0 %v555
    %860 = vmatprep.subr.bf16.mxu0 %v560
    %861 = vmatpush1.bf16.msra.mxu0 %v559
    %862 = vmatprep.subr.bf16.mxu0 %v564
    %863 = vmatpush1.bf16.msra.mxu0 %v563
    %864 = vmatprep.subr.bf16.mxu0 %v568
    %865 = vmatpush1.bf16.msra.mxu0 %v567
    %866 = vmatprep.subr.bf16.mxu0 %v572
    %867 = vmatpush1.bf16.msra.mxu0 %v571
    %868 = vmatprep.subr.bf16.mxu0 %v576
    %869 = vmatpush1.bf16.msra.mxu0 %v575
    %870 = vmatprep.subr.bf16.mxu0 0
    %871 = vmatpush1.bf16.msra.mxu0 0
    %872 = vmatprep.subr.bf16.mxu0 0
    %873 = vmatpush1.bf16.msra.mxu0 0
    %874 = vmatprep.subr.bf16.mxu0 0
    %875 = vmatpush1.bf16.msra.mxu0 0
    %876 = vmatprep.subr.bf16.mxu0 0
    %877 = vmatpush1.bf16.msra.mxu0 0
    %878 = vmatprep.subr.bf16.mxu0 0
    %879 = vmatpush1.bf16.msra.mxu0 0
    %880 = vmatprep.subr.bf16.mxu0 0
    %881 = vmatpush1.bf16.msra.mxu0 0
    %882 = vmatprep.subr.bf16.mxu0 0
    %883 = vmatpush1.bf16.msra.mxu0 0
    %884 = vmatprep.subr.bf16.mxu0 0
    %885 = vmatpush1.bf16.msra.mxu0 0
    %886 = vmatprep.mubr.bf16.mxu0 0
    %887 = vmatmul.mubr.bf16.gmra.mrb[0].mxu0 %v853
    %v888 = vpop.f32.mrb[0].mxu0
    %v889 = vadd.f32 0.0, %v888
    %v890 = vpop.f32.mrb[0].mxu0
    %v891 = vadd.f32 0.0, %v890
    %v892 = vpop.f32.mrb[0].mxu0
    %v893 = vpop.f32.mrb[0].mxu0
    %894 = vdwg.mxu0
    %895 = vmatprep.subr.bf16.mxu0 %v550
    %896 = vmatpush1.bf16.msra.mxu0 %v549
    %897 = vmatprep.subr.bf16.mxu0 %v554
    %898 = vmatpush1.bf16.msra.mxu0 %v553
    %899 = vmatprep.subr.bf16.mxu0 %v558
    %900 = vmatpush1.bf16.msra.mxu0 %v557
    %901 = vmatprep.subr.bf16.mxu0 %v562
    %902 = vmatpush1.bf16.msra.mxu0 %v561
    %903 = vmatprep.subr.bf16.mxu0 %v566
    %904 = vmatpush1.bf16.msra.mxu0 %v565
    %905 = vmatprep.subr.bf16.mxu0 %v570
    %906 = vmatpush1.bf16.msra.mxu0 %v569
    %907 = vmatprep.subr.bf16.mxu0 %v574
    %908 = vmatpush1.bf16.msra.mxu0 %v573
    %909 = vmatprep.subr.bf16.mxu0 %v578
    %910 = vmatpush1.bf16.msra.mxu0 %v577
    %911 = vmatprep.subr.bf16.mxu0 0
    %912 = vmatpush1.bf16.msra.mxu0 0
    %913 = vmatprep.subr.bf16.mxu0 0
    %914 = vmatpush1.bf16.msra.mxu0 0
    %915 = vmatprep.subr.bf16.mxu0 0
    %916 = vmatpush1.bf16.msra.mxu0 0
    %917 = vmatprep.subr.bf16.mxu0 0
    %918 = vmatpush1.bf16.msra.mxu0 0
    %919 = vmatprep.subr.bf16.mxu0 0
    %920 = vmatpush1.bf16.msra.mxu0 0
    %921 = vmatprep.subr.bf16.mxu0 0
    %922 = vmatpush1.bf16.msra.mxu0 0
    %923 = vmatprep.subr.bf16.mxu0 0
    %924 = vmatpush1.bf16.msra.mxu0 0
    %925 = vmatprep.subr.bf16.mxu0 0
    %926 = vmatpush1.bf16.msra.mxu0 0
    %927 = vmatprep.mubr.bf16.mxu0 0
    %928 = vmatmul.mubr.bf16.gmra.mrb[0].mxu0 %v853
    %v929 = vpop.f32.mrb[0].mxu0
    %v930 = vadd.f32 0.0, %v929
    %v931 = vpop.f32.mrb[0].mxu0
    %v932 = vadd.f32 0.0, %v931
    %v933 = vpop.f32.mrb[0].mxu0
    %v934 = vpop.f32.mrb[0].mxu0
    %935 = vdwg.mxu0
    %v936 = vadd.f32 %v849, %v889
    %v937 = vadd.f32 %v850, %v891
    %v938 = vadd.f32 %v851, %v930
    %v939 = vadd.f32 %v852, %v932
    %v940 = vmul.f32 %v936, 0.5
    %v941 = vmul.f32 %v937, 0.5
    %v942 = vmul.f32 %v938, 0.5
    %v943 = vtanh.pop %v940
    %v944 = vtanh.pop %v941
    %v945 = vtanh.pop %v942
    %v946 = vmul.f32 %v943, 0.5
    %v947 = vmul.f32 %v944, 0.5
    %v948 = vmul.f32 %v945, 0.5
    %v949 = vadd.f32 %v946, 0.5
    %v950 = vadd.f32 %v947, 0.5
    %v951 = vadd.f32 %v948, 0.5
    %v952 = vtanh.pop %v939
    %v953 = vmul.f32 %v950, %v833
    %v954 = vmul.f32 %v949, %v952
    %v955 = vadd.f32 %v953, %v954
    %v956 = vtanh.pop %v955
    %v957 = vmul.f32 %v951, %v956
    %vm958 = vcmp.gt.s32.totalorder %v444, 2
    %v959 = vsel %vm958, 1, 0
    %960 = vset.pattern.permute.xlu0 0
    %961 = vperm.xlu0 %960, %v959
    %v962 = vpop.permute.xlu0 %961
    %vm963 = vcmp.eq.s32.totalorder %v962, 1
    %v964 = vsel %vm963, %v957, 0.0
    %v965 = vpack.c.bf16 %v964, %v964
    %s966 = scalar_lea.vmem [#allocation3], 8
    %967 = vst [vmem:[%s966] sm:$0xf] %v965
    %s968 = scalar_lea.vmem [#allocation2], 48
    %v969 = vld [vmem:[%s968] sm:$0xff]
    %v970 = vld [vmem:[%s968 + $0x8] sm:$0xff]
    %v971 = vunpack.c.l.bf16 %v969
    %v972 = vunpack.c.h.bf16 %v969
    %v973 = vunpack.c.l.bf16 %v970
    %v974 = vunpack.c.h.bf16 %v970
    %v975 = vpack.c.bf16 %v957, %v957
    %976 = vmatprep.subr.bf16.mxu0 %v548
    %977 = vmatpush1.bf16.msra.mxu0 %v547
    %978 = vmatprep.subr.bf16.mxu0 %v552
    %979 = vmatpush1.bf16.msra.mxu0 %v551
    %980 = vmatprep.subr.bf16.mxu0 %v556
    %981 = vmatpush1.bf16.msra.mxu0 %v555
    %982 = vmatprep.subr.bf16.mxu0 %v560
    %983 = vmatpush1.bf16.msra.mxu0 %v559
    %984 = vmatprep.subr.bf16.mxu0 %v564
    %985 = vmatpush1.bf16.msra.mxu0 %v563
    %986 = vmatprep.subr.bf16.mxu0 %v568
    %987 = vmatpush1.bf16.msra.mxu0 %v567
    %988 = vmatprep.subr.bf16.mxu0 %v572
    %989 = vmatpush1.bf16.msra.mxu0 %v571
    %990 = vmatprep.subr.bf16.mxu0 %v576
    %991 = vmatpush1.bf16.msra.mxu0 %v575
    %992 = vmatprep.subr.bf16.mxu0 0
    %993 = vmatpush1.bf16.msra.mxu0 0
    %994 = vmatprep.subr.bf16.mxu0 0
    %995 = vmatpush1.bf16.msra.mxu0 0
    %996 = vmatprep.subr.bf16.mxu0 0
    %997 = vmatpush1.bf16.msra.mxu0 0
    %998 = vmatprep.subr.bf16.mxu0 0
    %999 = vmatpush1.bf16.msra.mxu0 0
    %1000 = vmatprep.subr.bf16.mxu0 0
    %1001 = vmatpush1.bf16.msra.mxu0 0
    %1002 = vmatprep.subr.bf16.mxu0 0
    %1003 = vmatpush1.bf16.msra.mxu0 0
    %1004 = vmatprep.subr.bf16.mxu0 0
    %1005 = vmatpush1.bf16.msra.mxu0 0
    %1006 = vmatprep.subr.bf16.mxu0 0
    %1007 = vmatpush1.bf16.msra.mxu0 0
    %1008 = vmatprep.mubr.bf16.mxu0 0
    %1009 = vmatmul.mubr.bf16.gmra.mrb[0].mxu0 %v975
    %v1010 = vpop.f32.mrb[0].mxu0
    %v1011 = vadd.f32 0.0, %v1010
    %v1012 = vpop.f32.mrb[0].mxu0
    %v1013 = vadd.f32 0.0, %v1012
    %v1014 = vpop.f32.mrb[0].mxu0
    %v1015 = vpop.f32.mrb[0].mxu0
    %1016 = vdwg.mxu0
    %1017 = vmatprep.subr.bf16.mxu0 %v550
    %1018 = vmatpush1.bf16.msra.mxu0 %v549
    %1019 = vmatprep.subr.bf16.mxu0 %v554
    %1020 = vmatpush1.bf16.msra.mxu0 %v553
    %1021 = vmatprep.subr.bf16.mxu0 %v558
    %1022 = vmatpush1.bf16.msra.mxu0 %v557
    %1023 = vmatprep.subr.bf16.mxu0 %v562
    %1024 = vmatpush1.bf16.msra.mxu0 %v561
    %1025 = vmatprep.subr.bf16.mxu0 %v566
    %1026 = vmatpush1.bf16.msra.mxu0 %v565
    %1027 = vmatprep.subr.bf16.mxu0 %v570
    %1028 = vmatpush1.bf16.msra.mxu0 %v569
    %1029 = vmatprep.subr.bf16.mxu0 %v574
    %1030 = vmatpush1.bf16.msra.mxu0 %v573
    %1031 = vmatprep.subr.bf16.mxu0 %v578
    %1032 = vmatpush1.bf16.msra.mxu0 %v577
    %1033 = vmatprep.subr.bf16.mxu0 0
    %1034 = vmatpush1.bf16.msra.mxu0 0
    %1035 = vmatprep.subr.bf16.mxu0 0
    %1036 = vmatpush1.bf16.msra.mxu0 0
    %1037 = vmatprep.subr.bf16.mxu0 0
    %1038 = vmatpush1.bf16.msra.mxu0 0
    %1039 = vmatprep.subr.bf16.mxu0 0
    %1040 = vmatpush1.bf16.msra.mxu0 0
    %1041 = vmatprep.subr.bf16.mxu0 0
    %1042 = vmatpush1.bf16.msra.mxu0 0
    %1043 = vmatprep.subr.bf16.mxu0 0
    %1044 = vmatpush1.bf16.msra.mxu0 0
    %1045 = vmatprep.subr.bf16.mxu0 0
    %1046 = vmatpush1.bf16.msra.mxu0 0
    %1047 = vmatprep.subr.bf16.mxu0 0
    %1048 = vmatpush1.bf16.msra.mxu0 0
    %1049 = vmatprep.mubr.bf16.mxu0 0
    %1050 = vmatmul.mubr.bf16.gmra.mrb[0].mxu0 %v975
    %v1051 = vpop.f32.mrb[0].mxu0
    %v1052 = vadd.f32 0.0, %v1051
    %v1053 = vpop.f32.mrb[0].mxu0
    %v1054 = vadd.f32 0.0, %v1053
    %v1055 = vpop.f32.mrb[0].mxu0
    %v1056 = vpop.f32.mrb[0].mxu0
    %1057 = vdwg.mxu0
    %v1058 = vadd.f32 %v971, %v1011
    %v1059 = vadd.f32 %v972, %v1013
    %v1060 = vadd.f32 %v973, %v1052
    %v1061 = vadd.f32 %v974, %v1054
    %v1062 = vmul.f32 %v1058, 0.5
    %v1063 = vmul.f32 %v1059, 0.5
    %v1064 = vmul.f32 %v1060, 0.5
    %v1065 = vtanh.pop %v1062
    %v1066 = vtanh.pop %v1063
    %v1067 = vtanh.pop %v1064
    %v1068 = vmul.f32 %v1065, 0.5
    %v1069 = vmul.f32 %v1066, 0.5
    %v1070 = vmul.f32 %v1067, 0.5
    %v1071 = vadd.f32 %v1068, 0.5
    %v1072 = vadd.f32 %v1069, 0.5
    %v1073 = vadd.f32 %v1070, 0.5
    %v1074 = vtanh.pop %v1061
    %v1075 = vmul.f32 %v1072, %v955
    %v1076 = vmul.f32 %v1071, %v1074
    %v1077 = vadd.f32 %v1075, %v1076
    %v1078 = vtanh.pop %v1077
    %v1079 = vmul.f32 %v1073, %v1078
    %vm1080 = vcmp.gt.s32.totalorder %v444, 3
    %v1081 = vsel %vm1080, 1, 0
    %1082 = vset.pattern.permute.xlu0 0
    %1083 = vperm.xlu0 %1082, %v1081
    %v1084 = vpop.permute.xlu0 %1083
    %vm1085 = vcmp.eq.s32.totalorder %v1084, 1
    %v1086 = vsel %vm1085, %v1079, 0.0
    %v1087 = vpack.c.bf16 %v1086, %v1086
    %s1088 = scalar_lea.vmem [#allocation3], 12
    %1089 = vst [vmem:[%s1088] sm:$0xf] %v1087
    %s1090 = scalar_lea.vmem [#allocation2], 64
    %v1091 = vld [vmem:[%s1090] sm:$0xff]
    %v1092 = vld [vmem:[%s1090 + $0x8] sm:$0xff]
    %v1093 = vunpack.c.l.bf16 %v1091
    %v1094 = vunpack.c.h.bf16 %v1091
    %v1095 = vunpack.c.l.bf16 %v1092
    %v1096 = vunpack.c.h.bf16 %v1092
    %v1097 = vpack.c.bf16 %v1079, %v1079
    %1098 = vmatprep.subr.bf16.mxu0 %v548
    %1099 = vmatpush1.bf16.msra.mxu0 %v547
    %1100 = vmatprep.subr.bf16.mxu0 %v552
    %1101 = vmatpush1.bf16.msra.mxu0 %v551
    %1102 = vmatprep.subr.bf16.mxu0 %v556
    %1103 = vmatpush1.bf16.msra.mxu0 %v555
    %1104 = vmatprep.subr.bf16.mxu0 %v560
    %1105 = vmatpush1.bf16.msra.mxu0 %v559
    %1106 = vmatprep.subr.bf16.mxu0 %v564
    %1107 = vmatpush1.bf16.msra.mxu0 %v563
    %1108 = vmatprep.subr.bf16.mxu0 %v568
    %1109 = vmatpush1.bf16.msra.mxu0 %v567
    %1110 = vmatprep.subr.bf16.mxu0 %v572
    %1111 = vmatpush1.bf16.msra.mxu0 %v571
    %1112 = vmatprep.subr.bf16.mxu0 %v576
    %1113 = vmatpush1.bf16.msra.mxu0 %v575
    %1114 = vmatprep.subr.bf16.mxu0 0
    %1115 = vmatpush1.bf16.msra.mxu0 0
    %1116 = vmatprep.subr.bf16.mxu0 0
    %1117 = vmatpush1.bf16.msra.mxu0 0
    %1118 = vmatprep.subr.bf16.mxu0 0
    %1119 = vmatpush1.bf16.msra.mxu0 0
    %1120 = vmatprep.subr.bf16.mxu0 0
    %1121 = vmatpush1.bf16.msra.mxu0 0
    %1122 = vmatprep.subr.bf16.mxu0 0
    %1123 = vmatpush1.bf16.msra.mxu0 0
    %1124 = vmatprep.subr.bf16.mxu0 0
    %1125 = vmatpush1.bf16.msra.mxu0 0
    %1126 = vmatprep.subr.bf16.mxu0 0
    %1127 = vmatpush1.bf16.msra.mxu0 0
    %1128 = vmatprep.subr.bf16.mxu0 0
    %1129 = vmatpush1.bf16.msra.mxu0 0
    %1130 = vmatprep.mubr.bf16.mxu0 0
    %1131 = vmatmul.mubr.bf16.gmra.mrb[0].mxu0 %v1097
    %v1132 = vpop.f32.mrb[0].mxu0
    %v1133 = vadd.f32 0.0, %v1132
    %v1134 = vpop.f32.mrb[0].mxu0
    %v1135 = vadd.f32 0.0, %v1134
    %v1136 = vpop.f32.mrb[0].mxu0
    %v1137 = vpop.f32.mrb[0].mxu0
    %1138 = vdwg.mxu0
    %1139 = vmatprep.subr.bf16.mxu0 %v550
    %1140 = vmatpush1.bf16.msra.mxu0 %v549
    %1141 = vmatprep.subr.bf16.mxu0 %v554
    %1142 = vmatpush1.bf16.msra.mxu0 %v553
    %1143 = vmatprep.subr.bf16.mxu0 %v558
    %1144 = vmatpush1.bf16.msra.mxu0 %v557
    %1145 = vmatprep.subr.bf16.mxu0 %v562
    %1146 = vmatpush1.bf16.msra.mxu0 %v561
    %1147 = vmatprep.subr.bf16.mxu0 %v566
    %1148 = vmatpush1.bf16.msra.mxu0 %v565
    %1149 = vmatprep.subr.bf16.mxu0 %v570
    %1150 = vmatpush1.bf16.msra.mxu0 %v569
    %1151 = vmatprep.subr.bf16.mxu0 %v574
    %1152 = vmatpush1.bf16.msra.mxu0 %v573
    %1153 = vmatprep.subr.bf16.mxu0 %v578
    %1154 = vmatpush1.bf16.msra.mxu0 %v577
    %1155 = vmatprep.subr.bf16.mxu0 0
    %1156 = vmatpush1.bf16.msra.mxu0 0
    %1157 = vmatprep.subr.bf16.mxu0 0
    %1158 = vmatpush1.bf16.msra.mxu0 0
    %1159 = vmatprep.subr.bf16.mxu0 0
    %1160 = vmatpush1.bf16.msra.mxu0 0
    %1161 = vmatprep.subr.bf16.mxu0 0
    %1162 = vmatpush1.bf16.msra.mxu0 0
    %1163 = vmatprep.subr.bf16.mxu0 0
    %1164 = vmatpush1.bf16.msra.mxu0 0
    %1165 = vmatprep.subr.bf16.mxu0 0
    %1166 = vmatpush1.bf16.msra.mxu0 0
    %1167 = vmatprep.subr.bf16.mxu0 0
    %1168 = vmatpush1.bf16.msra.mxu0 0
    %1169 = vmatprep.subr.bf16.mxu0 0
    %1170 = vmatpush1.bf16.msra.mxu0 0
    %1171 = vmatprep.mubr.bf16.mxu0 0
    %1172 = vmatmul.mubr.bf16.gmra.mrb[0].mxu0 %v1097
    %v1173 = vpop.f32.mrb[0].mxu0
    %v1174 = vadd.f32 0.0, %v1173
    %v1175 = vpop.f32.mrb[0].mxu0
    %v1176 = vadd.f32 0.0, %v1175
    %v1177 = vpop.f32.mrb[0].mxu0
    %v1178 = vpop.f32.mrb[0].mxu0
    %1179 = vdwg.mxu0
    %v1180 = vadd.f32 %v1093, %v1133
    %v1181 = vadd.f32 %v1094, %v1135
    %v1182 = vadd.f32 %v1095, %v1174
    %v1183 = vadd.f32 %v1096, %v1176
    %v1184 = vmul.f32 %v1180, 0.5
    %v1185 = vmul.f32 %v1181, 0.5
    %v1186 = vmul.f32 %v1182, 0.5
    %v1187 = vtanh.pop %v1184
    %v1188 = vtanh.pop %v1185
    %v1189 = vtanh.pop %v1186
    %v1190 = vmul.f32 %v1187, 0.5
    %v1191 = vmul.f32 %v1188, 0.5
    %v1192 = vmul.f32 %v1189, 0.5
    %v1193 = vadd.f32 %v1190, 0.5
    %v1194 = vadd.f32 %v1191, 0.5
    %v1195 = vadd.f32 %v1192, 0.5
    %v1196 = vtanh.pop %v1183
    %v1197 = vmul.f32 %v1194, %v1077
    %v1198 = vmul.f32 %v1193, %v1196
    %v1199 = vadd.f32 %v1197, %v1198
    %v1200 = vtanh.pop %v1199
    %v1201 = vmul.f32 %v1195, %v1200
    %vm1202 = vcmp.gt.s32.totalorder %v444, 4
    %v1203 = vsel %vm1202, 1, 0
    %1204 = vset.pattern.permute.xlu0 0
    %1205 = vperm.xlu0 %1204, %v1203
    %v1206 = vpop.permute.xlu0 %1205
    %vm1207 = vcmp.eq.s32.totalorder %v1206, 1
    %v1208 = vsel %vm1207, %v1201, 0.0
    %v1209 = vpack.c.bf16 %v1208, %v1208
    %s1210 = scalar_lea.vmem [#allocation3], 16
    %1211 = vst [vmem:[%s1210] sm:$0xf] %v1209
    %s1212 = scalar_lea.vmem [#allocation2], 80
    %v1213 = vld [vmem:[%s1212] sm:$0xff]
    %v1214 = vld [vmem:[%s1212 + $0x8] sm:$0xff]
    %v1215 = vunpack.c.l.bf16 %v1213
    %v1216 = vunpack.c.h.bf16 %v1213
    %v1217 = vunpack.c.l.bf16 %v1214
    %v1218 = vunpack.c.h.bf16 %v1214
    %v1219 = vpack.c.bf16 %v1201, %v1201
    %1220 = vmatprep.subr.bf16.mxu0 %v548
    %1221 = vmatpush1.bf16.msra.mxu0 %v547
    %1222 = vmatprep.subr.bf16.mxu0 %v552
    %1223 = vmatpush1.bf16.msra.mxu0 %v551
    %1224 = vmatprep.subr.bf16.mxu0 %v556
    %1225 = vmatpush1.bf16.msra.mxu0 %v555
    %1226 = vmatprep.subr.bf16.mxu0 %v560
    %1227 = vmatpush1.bf16.msra.mxu0 %v559
    %1228 = vmatprep.subr.bf16.mxu0 %v564
    %1229 = vmatpush1.bf16.msra.mxu0 %v563
    %1230 = vmatprep.subr.bf16.mxu0 %v568
    %1231 = vmatpush1.bf16.msra.mxu0 %v567
    %1232 = vmatprep.subr.bf16.mxu0 %v572
    %1233 = vmatpush1.bf16.msra.mxu0 %v571
    %1234 = vmatprep.subr.bf16.mxu0 %v576
    %1235 = vmatpush1.bf16.msra.mxu0 %v575
    %1236 = vmatprep.subr.bf16.mxu0 0
    %1237 = vmatpush1.bf16.msra.mxu0 0
    %1238 = vmatprep.subr.bf16.mxu0 0
    %1239 = vmatpush1.bf16.msra.mxu0 0
    %1240 = vmatprep.subr.bf16.mxu0 0
    %1241 = vmatpush1.bf16.msra.mxu0 0
    %1242 = vmatprep.subr.bf16.mxu0 0
    %1243 = vmatpush1.bf16.msra.mxu0 0
    %1244 = vmatprep.subr.bf16.mxu0 0
    %1245 = vmatpush1.bf16.msra.mxu0 0
    %1246 = vmatprep.subr.bf16.mxu0 0
    %1247 = vmatpush1.bf16.msra.mxu0 0
    %1248 = vmatprep.subr.bf16.mxu0 0
    %1249 = vmatpush1.bf16.msra.mxu0 0
    %1250 = vmatprep.subr.bf16.mxu0 0
    %1251 = vmatpush1.bf16.msra.mxu0 0
    %1252 = vmatprep.mubr.bf16.mxu0 0
    %1253 = vmatmul.mubr.bf16.gmra.mrb[0].mxu0 %v1219
    %v1254 = vpop.f32.mrb[0].mxu0
    %v1255 = vadd.f32 0.0, %v1254
    %v1256 = vpop.f32.mrb[0].mxu0
    %v1257 = vadd.f32 0.0, %v1256
    %v1258 = vpop.f32.mrb[0].mxu0
    %v1259 = vpop.f32.mrb[0].mxu0
    %1260 = vdwg.mxu0
    %1261 = vmatprep.subr.bf16.mxu0 %v550
    %1262 = vmatpush1.bf16.msra.mxu0 %v549
    %1263 = vmatprep.subr.bf16.mxu0 %v554
    %1264 = vmatpush1.bf16.msra.mxu0 %v553
    %1265 = vmatprep.subr.bf16.mxu0 %v558
    %1266 = vmatpush1.bf16.msra.mxu0 %v557
    %1267 = vmatprep.subr.bf16.mxu0 %v562
    %1268 = vmatpush1.bf16.msra.mxu0 %v561
    %1269 = vmatprep.subr.bf16.mxu0 %v566
    %1270 = vmatpush1.bf16.msra.mxu0 %v565
    %1271 = vmatprep.subr.bf16.mxu0 %v570
    %1272 = vmatpush1.bf16.msra.mxu0 %v569
    %1273 = vmatprep.subr.bf16.mxu0 %v574
    %1274 = vmatpush1.bf16.msra.mxu0 %v573
    %1275 = vmatprep.subr.bf16.mxu0 %v578
    %1276 = vmatpush1.bf16.msra.mxu0 %v577
    %1277 = vmatprep.subr.bf16.mxu0 0
    %1278 = vmatpush1.bf16.msra.mxu0 0
    %1279 = vmatprep.subr.bf16.mxu0 0
    %1280 = vmatpush1.bf16.msra.mxu0 0
    %1281 = vmatprep.subr.bf16.mxu0 0
    %1282 = vmatpush1.bf16.msra.mxu0 0
    %1283 = vmatprep.subr.bf16.mxu0 0
    %1284 = vmatpush1.bf16.msra.mxu0 0
    %1285 = vmatprep.subr.bf16.mxu0 0
    %1286 = vmatpush1.bf16.msra.mxu0 0
    %1287 = vmatprep.subr.bf16.mxu0 0
    %1288 = vmatpush1.bf16.msra.mxu0 0
    %1289 = vmatprep.subr.bf16.mxu0 0
    %1290 = vmatpush1.bf16.msra.mxu0 0
    %1291 = vmatprep.subr.bf16.mxu0 0
    %1292 = vmatpush1.bf16.msra.mxu0 0
    %1293 = vmatprep.mubr.bf16.mxu0 0
    %1294 = vmatmul.mubr.bf16.gmra.mrb[0].mxu0 %v1219
    %v1295 = vpop.f32.mrb[0].mxu0
    %v1296 = vadd.f32 0.0, %v1295
    %v1297 = vpop.f32.mrb[0].mxu0
    %v1298 = vadd.f32 0.0, %v1297
    %v1299 = vpop.f32.mrb[0].mxu0
    %v1300 = vpop.f32.mrb[0].mxu0
    %1301 = vdwg.mxu0
    %v1302 = vadd.f32 %v1215, %v1255
    %v1303 = vadd.f32 %v1216, %v1257
    %v1304 = vadd.f32 %v1217, %v1296
    %v1305 = vadd.f32 %v1218, %v1298
    %v1306 = vmul.f32 %v1302, 0.5
    %v1307 = vmul.f32 %v1303, 0.5
    %v1308 = vmul.f32 %v1304, 0.5
    %v1309 = vtanh.pop %v1306
    %v1310 = vtanh.pop %v1307
    %v1311 = vtanh.pop %v1308
    %v1312 = vmul.f32 %v1309, 0.5
    %v1313 = vmul.f32 %v1310, 0.5
    %v1314 = vmul.f32 %v1311, 0.5
    %v1315 = vadd.f32 %v1312, 0.5
    %v1316 = vadd.f32 %v1313, 0.5
    %v1317 = vadd.f32 %v1314, 0.5
    %v1318 = vtanh.pop %v1305
    %v1319 = vmul.f32 %v1316, %v1199
    %v1320 = vmul.f32 %v1315, %v1318
    %v1321 = vadd.f32 %v1319, %v1320
    %v1322 = vtanh.pop %v1321
    %v1323 = vmul.f32 %v1317, %v1322
    %vm1324 = vcmp.gt.s32.totalorder %v444, 5
    %v1325 = vsel %vm1324, 1, 0
    %1326 = vset.pattern.permute.xlu0 0
    %1327 = vperm.xlu0 %1326, %v1325
    %v1328 = vpop.permute.xlu0 %1327
    %vm1329 = vcmp.eq.s32.totalorder %v1328, 1
    %v1330 = vsel %vm1329, %v1323, 0.0
    %v1331 = vpack.c.bf16 %v1330, %v1330
    %s1332 = scalar_lea.vmem [#allocation3], 20
    %1333 = vst [vmem:[%s1332] sm:$0xf] %v1331
    %s1334 = scalar_lea.vmem [#allocation2], 96
    %v1335 = vld [vmem:[%s1334] sm:$0xff]
    %v1336 = vld [vmem:[%s1334 + $0x8] sm:$0xff]
    %v1337 = vunpack.c.l.bf16 %v1335
    %v1338 = vunpack.c.h.bf16 %v1335
    %v1339 = vunpack.c.l.bf16 %v1336
    %v1340 = vunpack.c.h.bf16 %v1336
    %v1341 = vpack.c.bf16 %v1323, %v1323
    %1342 = vmatprep.subr.bf16.mxu0 %v548
    %1343 = vmatpush1.bf16.msra.mxu0 %v547
    %1344 = vmatprep.subr.bf16.mxu0 %v552
    %1345 = vmatpush1.bf16.msra.mxu0 %v551
    %1346 = vmatprep.subr.bf16.mxu0 %v556
    %1347 = vmatpush1.bf16.msra.mxu0 %v555
    %1348 = vmatprep.subr.bf16.mxu0 %v560
    %1349 = vmatpush1.bf16.msra.mxu0 %v559
    %1350 = vmatprep.subr.bf16.mxu0 %v564
    %1351 = vmatpush1.bf16.msra.mxu0 %v563
    %1352 = vmatprep.subr.bf16.mxu0 %v568
    %1353 = vmatpush1.bf16.msra.mxu0 %v567
    %1354 = vmatprep.subr.bf16.mxu0 %v572
    %1355 = vmatpush1.bf16.msra.mxu0 %v571
    %1356 = vmatprep.subr.bf16.mxu0 %v576
    %1357 = vmatpush1.bf16.msra.mxu0 %v575
    %1358 = vmatprep.subr.bf16.mxu0 0
    %1359 = vmatpush1.bf16.msra.mxu0 0
    %1360 = vmatprep.subr.bf16.mxu0 0
    %1361 = vmatpush1.bf16.msra.mxu0 0
    %1362 = vmatprep.subr.bf16.mxu0 0
    %1363 = vmatpush1.bf16.msra.mxu0 0
    %1364 = vmatprep.subr.bf16.mxu0 0
    %1365 = vmatpush1.bf16.msra.mxu0 0
    %1366 = vmatprep.subr.bf16.mxu0 0
    %1367 = vmatpush1.bf16.msra.mxu0 0
    %1368 = vmatprep.subr.bf16.mxu0 0
    %1369 = vmatpush1.bf16.msra.mxu0 0
    %1370 = vmatprep.subr.bf16.mxu0 0
    %1371 = vmatpush1.bf16.msra.mxu0 0
    %1372 = vmatprep.subr.bf16.mxu0 0
    %1373 = vmatpush1.bf16.msra.mxu0 0
    %1374 = vmatprep.mubr.bf16.mxu0 0
    %1375 = vmatmul.mubr.bf16.gmra.mrb[0].mxu0 %v1341
    %v1376 = vpop.f32.mrb[0].mxu0
    %v1377 = vadd.f32 0.0, %v1376
    %v1378 = vpop.f32.mrb[0].mxu0
    %v1379 = vadd.f32 0.0, %v1378
    %v1380 = vpop.f32.mrb[0].mxu0
    %v1381 = vpop.f32.mrb[0].mxu0
    %1382 = vdwg.mxu0
    %1383 = vmatprep.subr.bf16.mxu0 %v550
    %1384 = vmatpush1.bf16.msra.mxu0 %v549
    %1385 = vmatprep.subr.bf16.mxu0 %v554
    %1386 = vmatpush1.bf16.msra.mxu0 %v553
    %1387 = vmatprep.subr.bf16.mxu0 %v558
    %1388 = vmatpush1.bf16.msra.mxu0 %v557
    %1389 = vmatprep.subr.bf16.mxu0 %v562
    %1390 = vmatpush1.bf16.msra.mxu0 %v561
    %1391 = vmatprep.subr.bf16.mxu0 %v566
    %1392 = vmatpush1.bf16.msra.mxu0 %v565
    %1393 = vmatprep.subr.bf16.mxu0 %v570
    %1394 = vmatpush1.bf16.msra.mxu0 %v569
    %1395 = vmatprep.subr.bf16.mxu0 %v574
    %1396 = vmatpush1.bf16.msra.mxu0 %v573
    %1397 = vmatprep.subr.bf16.mxu0 %v578
    %1398 = vmatpush1.bf16.msra.mxu0 %v577
    %1399 = vmatprep.subr.bf16.mxu0 0
    %1400 = vmatpush1.bf16.msra.mxu0 0
    %1401 = vmatprep.subr.bf16.mxu0 0
    %1402 = vmatpush1.bf16.msra.mxu0 0
    %1403 = vmatprep.subr.bf16.mxu0 0
    %1404 = vmatpush1.bf16.msra.mxu0 0
    %1405 = vmatprep.subr.bf16.mxu0 0
    %1406 = vmatpush1.bf16.msra.mxu0 0
    %1407 = vmatprep.subr.bf16.mxu0 0
    %1408 = vmatpush1.bf16.msra.mxu0 0
    %1409 = vmatprep.subr.bf16.mxu0 0
    %1410 = vmatpush1.bf16.msra.mxu0 0
    %1411 = vmatprep.subr.bf16.mxu0 0
    %1412 = vmatpush1.bf16.msra.mxu0 0
    %1413 = vmatprep.subr.bf16.mxu0 0
    %1414 = vmatpush1.bf16.msra.mxu0 0
    %1415 = vmatprep.mubr.bf16.mxu0 0
    %1416 = vmatmul.mubr.bf16.gmra.mrb[0].mxu0 %v1341
    %v1417 = vpop.f32.mrb[0].mxu0
    %v1418 = vadd.f32 0.0, %v1417
    %v1419 = vpop.f32.mrb[0].mxu0
    %v1420 = vadd.f32 0.0, %v1419
    %v1421 = vpop.f32.mrb[0].mxu0
    %v1422 = vpop.f32.mrb[0].mxu0
    %1423 = vdwg.mxu0
    %v1424 = vadd.f32 %v1337, %v1377
    %v1425 = vadd.f32 %v1338, %v1379
    %v1426 = vadd.f32 %v1339, %v1418
    %v1427 = vadd.f32 %v1340, %v1420
    %v1428 = vmul.f32 %v1424, 0.5
    %v1429 = vmul.f32 %v1425, 0.5
    %v1430 = vmul.f32 %v1426, 0.5
    %v1431 = vtanh.pop %v1428
    %v1432 = vtanh.pop %v1429
    %v1433 = vtanh.pop %v1430
    %v1434 = vmul.f32 %v1431, 0.5
    %v1435 = vmul.f32 %v1432, 0.5
    %v1436 = vmul.f32 %v1433, 0.5
    %v1437 = vadd.f32 %v1434, 0.5
    %v1438 = vadd.f32 %v1435, 0.5
    %v1439 = vadd.f32 %v1436, 0.5
    %v1440 = vtanh.pop %v1427
    %v1441 = vmul.f32 %v1438, %v1321
    %v1442 = vmul.f32 %v1437, %v1440
    %v1443 = vadd.f32 %v1441, %v1442
    %v1444 = vtanh.pop %v1443
    %v1445 = vmul.f32 %v1439, %v1444
    %vm1446 = vcmp.gt.s32.totalorder %v444, 6
    %v1447 = vsel %vm1446, 1, 0
    %1448 = vset.pattern.permute.xlu0 0
    %1449 = vperm.xlu0 %1448, %v1447
    %v1450 = vpop.permute.xlu0 %1449
    %vm1451 = vcmp.eq.s32.totalorder %v1450, 1
    %v1452 = vsel %vm1451, %v1445, 0.0
    %v1453 = vpack.c.bf16 %v1452, %v1452
    %s1454 = scalar_lea.vmem [#allocation3], 24
    %1455 = vst [vmem:[%s1454] sm:$0xf] %v1453
    %s1456 = scalar_lea.vmem [#allocation2], 112
    %v1457 = vld [vmem:[%s1456] sm:$0xff]
    %v1458 = vld [vmem:[%s1456 + $0x8] sm:$0xff]
    %v1459 = vunpack.c.l.bf16 %v1457
    %v1460 = vunpack.c.h.bf16 %v1457
    %v1461 = vunpack.c.l.bf16 %v1458
    %v1462 = vunpack.c.h.bf16 %v1458
    %v1463 = vpack.c.bf16 %v1445, %v1445
    %1464 = vmatprep.subr.bf16.mxu0 %v548
    %1465 = vmatpush1.bf16.msra.mxu0 %v547
    %1466 = vmatprep.subr.bf16.mxu0 %v552
    %1467 = vmatpush1.bf16.msra.mxu0 %v551
    %1468 = vmatprep.subr.bf16.mxu0 %v556
    %1469 = vmatpush1.bf16.msra.mxu0 %v555
    %1470 = vmatprep.subr.bf16.mxu0 %v560
    %1471 = vmatpush1.bf16.msra.mxu0 %v559
    %1472 = vmatprep.subr.bf16.mxu0 %v564
    %1473 = vmatpush1.bf16.msra.mxu0 %v563
    %1474 = vmatprep.subr.bf16.mxu0 %v568
    %1475 = vmatpush1.bf16.msra.mxu0 %v567
    %1476 = vmatprep.subr.bf16.mxu0 %v572
    %1477 = vmatpush1.bf16.msra.mxu0 %v571
    %1478 = vmatprep.subr.bf16.mxu0 %v576
    %1479 = vmatpush1.bf16.msra.mxu0 %v575
    %1480 = vmatprep.subr.bf16.mxu0 0
    %1481 = vmatpush1.bf16.msra.mxu0 0
    %1482 = vmatprep.subr.bf16.mxu0 0
    %1483 = vmatpush1.bf16.msra.mxu0 0
    %1484 = vmatprep.subr.bf16.mxu0 0
    %1485 = vmatpush1.bf16.msra.mxu0 0
    %1486 = vmatprep.subr.bf16.mxu0 0
    %1487 = vmatpush1.bf16.msra.mxu0 0
    %1488 = vmatprep.subr.bf16.mxu0 0
    %1489 = vmatpush1.bf16.msra.mxu0 0
    %1490 = vmatprep.subr.bf16.mxu0 0
    %1491 = vmatpush1.bf16.msra.mxu0 0
    %1492 = vmatprep.subr.bf16.mxu0 0
    %1493 = vmatpush1.bf16.msra.mxu0 0
    %1494 = vmatprep.subr.bf16.mxu0 0
    %1495 = vmatpush1.bf16.msra.mxu0 0
    %1496 = vmatprep.mubr.bf16.mxu0 0
    %1497 = vmatmul.mubr.bf16.gmra.mrb[0].mxu0 %v1463
    %v1498 = vpop.f32.mrb[0].mxu0
    %v1499 = vadd.f32 0.0, %v1498
    %v1500 = vpop.f32.mrb[0].mxu0
    %v1501 = vadd.f32 0.0, %v1500
    %v1502 = vpop.f32.mrb[0].mxu0
    %v1503 = vpop.f32.mrb[0].mxu0
    %1504 = vdwg.mxu0
    %1505 = vmatprep.subr.bf16.mxu0 %v550
    %1506 = vmatpush1.bf16.msra.mxu0 %v549
    %1507 = vmatprep.subr.bf16.mxu0 %v554
    %1508 = vmatpush1.bf16.msra.mxu0 %v553
    %1509 = vmatprep.subr.bf16.mxu0 %v558
    %1510 = vmatpush1.bf16.msra.mxu0 %v557
    %1511 = vmatprep.subr.bf16.mxu0 %v562
    %1512 = vmatpush1.bf16.msra.mxu0 %v561
    %1513 = vmatprep.subr.bf16.mxu0 %v566
    %1514 = vmatpush1.bf16.msra.mxu0 %v565
    %1515 = vmatprep.subr.bf16.mxu0 %v570
    %1516 = vmatpush1.bf16.msra.mxu0 %v569
    %1517 = vmatprep.subr.bf16.mxu0 %v574
    %1518 = vmatpush1.bf16.msra.mxu0 %v573
    %1519 = vmatprep.subr.bf16.mxu0 %v578
    %1520 = vmatpush1.bf16.msra.mxu0 %v577
    %1521 = vmatprep.subr.bf16.mxu0 0
    %1522 = vmatpush1.bf16.msra.mxu0 0
    %1523 = vmatprep.subr.bf16.mxu0 0
    %1524 = vmatpush1.bf16.msra.mxu0 0
    %1525 = vmatprep.subr.bf16.mxu0 0
    %1526 = vmatpush1.bf16.msra.mxu0 0
    %1527 = vmatprep.subr.bf16.mxu0 0
    %1528 = vmatpush1.bf16.msra.mxu0 0
    %1529 = vmatprep.subr.bf16.mxu0 0
    %1530 = vmatpush1.bf16.msra.mxu0 0
    %1531 = vmatprep.subr.bf16.mxu0 0
    %1532 = vmatpush1.bf16.msra.mxu0 0
    %1533 = vmatprep.subr.bf16.mxu0 0
    %1534 = vmatpush1.bf16.msra.mxu0 0
    %1535 = vmatprep.subr.bf16.mxu0 0
    %1536 = vmatpush1.bf16.msra.mxu0 0
    %1537 = vmatprep.mubr.bf16.mxu0 0
    %1538 = vmatmul.mubr.bf16.gmra.mrb[0].mxu0 %v1463
    %v1539 = vpop.f32.mrb[0].mxu0
    %v1540 = vadd.f32 0.0, %v1539
    %v1541 = vpop.f32.mrb[0].mxu0
    %v1542 = vadd.f32 0.0, %v1541
    %v1543 = vpop.f32.mrb[0].mxu0
    %v1544 = vpop.f32.mrb[0].mxu0
    %1545 = vdwg.mxu0
    %v1546 = vadd.f32 %v1459, %v1499
    %v1547 = vadd.f32 %v1460, %v1501
    %v1548 = vadd.f32 %v1461, %v1540
    %v1549 = vadd.f32 %v1462, %v1542
    %v1550 = vmul.f32 %v1546, 0.5
    %v1551 = vmul.f32 %v1547, 0.5
    %v1552 = vmul.f32 %v1548, 0.5
    %v1553 = vtanh.pop %v1550
    %v1554 = vtanh.pop %v1551
    %v1555 = vtanh.pop %v1552
    %v1556 = vmul.f32 %v1553, 0.5
    %v1557 = vmul.f32 %v1554, 0.5
    %v1558 = vmul.f32 %v1555, 0.5
    %v1559 = vadd.f32 %v1556, 0.5
    %v1560 = vadd.f32 %v1557, 0.5
    %v1561 = vadd.f32 %v1558, 0.5
    %v1562 = vtanh.pop %v1549
    %v1563 = vmul.f32 %v1560, %v1443
    %v1564 = vmul.f32 %v1559, %v1562
    %v1565 = vadd.f32 %v1563, %v1564
    %v1566 = vtanh.pop %v1565
    %v1567 = vmul.f32 %v1561, %v1566
    %vm1568 = vcmp.gt.s32.totalorder %v444, 7
    %v1569 = vsel %vm1568, 1, 0
    %1570 = vset.pattern.permute.xlu0 0
    %1571 = vperm.xlu0 %1570, %v1569
    %v1572 = vpop.permute.xlu0 %1571
    %vm1573 = vcmp.eq.s32.totalorder %v1572, 1
    %v1574 = vsel %vm1573, %v1567, 0.0
    %v1575 = vpack.c.bf16 %v1574, %v1574
    %s1576 = scalar_lea.vmem [#allocation3], 28
    %1577 = vst [vmem:[%s1576] sm:$0xf] %v1575
    %v1578 = vld [vmem:[#allocation3] sm:$0xf]
    %v1579 = vld [vmem:[#allocation3 + $0x4] sm:$0xf]
    %v1580 = vld [vmem:[#allocation3 + $0x8] sm:$0xf]
    %v1581 = vld [vmem:[#allocation3 + $0xc] sm:$0xf]
    %v1582 = vld [vmem:[#allocation3 + $0x10] sm:$0xf]
    %v1583 = vld [vmem:[#allocation3 + $0x14] sm:$0xf]
    %v1584 = vld [vmem:[#allocation3 + $0x18] sm:$0xf]
    %v1585 = vld [vmem:[#allocation3 + $0x1c] sm:$0xf]
    %v1586 = vld [vmem:[%s5] sm:$0xf]
    %v1587 = vld [vmem:[%s5 + $0x4] sm:$0xf]
    %v1588 = vld [vmem:[%s5 + $0x8] sm:$0xf]
    %v1589 = vld [vmem:[%s5 + $0xc] sm:$0xf]
    %v1590 = vld [vmem:[%s5 + $0x10] sm:$0xf]
    %v1591 = vld [vmem:[%s5 + $0x14] sm:$0xf]
    %v1592 = vld [vmem:[%s5 + $0x18] sm:$0xf]
    %v1593 = vld [vmem:[%s5 + $0x1c] sm:$0xf]
    %v1594 = vld [vmem:[%s5 + $0x20] sm:$0xf]
    %v1595 = vld [vmem:[%s5 + $0x24] sm:$0xf]
    %v1596 = vld [vmem:[%s5 + $0x28] sm:$0xf]
    %v1597 = vld [vmem:[%s5 + $0x2c] sm:$0xf]
    %v1598 = vld [vmem:[%s5 + $0x30] sm:$0xf]
    %v1599 = vld [vmem:[%s5 + $0x34] sm:$0xf]
    %v1600 = vld [vmem:[%s5 + $0x38] sm:$0xf]
    %v1601 = vld [vmem:[%s5 + $0x3c] sm:$0xf]
    %v1602 = vld [vmem:[%s6] sm:$0x1]
    %v1604 = vlaneseq
    %v1605 = vshrl.u32 %v1604, 7
    %v1606 = vsub.s32 0, %v1605
    %v1607 = vrot.slane %v1602, %v1606
    %v1617 = vunpack.c.l.b16 %v1578
    %v1618 = vunpack.c.l.b16 %v1579
    %v1619 = vunpack.c.l.b16 %v1580
    %v1620 = vunpack.c.l.b16 %v1581
    %v1621 = vunpack.c.l.b16 %v1582
    %v1622 = vunpack.c.l.b16 %v1583
    %v1623 = vunpack.c.l.b16 %v1584
    %v1624 = vunpack.c.l.b16 %v1585
    %v1625 = vpack.c.b16 %v1618, %v1617
    %v1626 = vpack.c.b16 %v1620, %v1619
    %v1627 = vpack.c.b16 %v1622, %v1621
    %v1628 = vpack.c.b16 %v1624, %v1623
    %v1649 = vunpack.c.l.b16 %v1586
    %v1650 = vunpack.c.l.b16 %v1587
    %v1651 = vunpack.c.l.b16 %v1588
    %v1652 = vunpack.c.l.b16 %v1589
    %v1653 = vunpack.c.l.b16 %v1590
    %v1654 = vunpack.c.l.b16 %v1591
    %v1655 = vunpack.c.l.b16 %v1592
    %v1656 = vunpack.c.l.b16 %v1593
    %v1657 = vunpack.c.l.b16 %v1594
    %v1658 = vunpack.c.l.b16 %v1595
    %v1659 = vunpack.c.l.b16 %v1596
    %v1660 = vunpack.c.l.b16 %v1597
    %v1661 = vunpack.c.l.b16 %v1598
    %v1662 = vunpack.c.l.b16 %v1599
    %v1663 = vunpack.c.l.b16 %v1600
    %v1664 = vunpack.c.l.b16 %v1601
    %v1665 = vpack.c.b16 %v1650, %v1649
    %v1666 = vpack.c.b16 %v1652, %v1651
    %v1667 = vpack.c.b16 %v1654, %v1653
    %v1668 = vpack.c.b16 %v1656, %v1655
    %v1669 = vpack.c.b16 %v1658, %v1657
    %v1670 = vpack.c.b16 %v1660, %v1659
    %v1671 = vpack.c.b16 %v1662, %v1661
    %v1672 = vpack.c.b16 %v1664, %v1663
    %1681 = vmatprep.subr.bf16.mxu0 0
    %1682 = vmatpush1.bf16.msra.mxu0 %v1665
    %1683 = vmatprep.subr.bf16.mxu0 0
    %1684 = vmatpush1.bf16.msra.mxu0 %v1666
    %1685 = vmatprep.subr.bf16.mxu0 0
    %1686 = vmatpush1.bf16.msra.mxu0 %v1667
    %1687 = vmatprep.subr.bf16.mxu0 0
    %1688 = vmatpush1.bf16.msra.mxu0 %v1668
    %1689 = vmatprep.subr.bf16.mxu0 0
    %1690 = vmatpush1.bf16.msra.mxu0 %v1669
    %1691 = vmatprep.subr.bf16.mxu0 0
    %1692 = vmatpush1.bf16.msra.mxu0 %v1670
    %1693 = vmatprep.subr.bf16.mxu0 0
    %1694 = vmatpush1.bf16.msra.mxu0 %v1671
    %1695 = vmatprep.subr.bf16.mxu0 0
    %1696 = vmatpush1.bf16.msra.mxu0 %v1672
    %1697 = vmatprep.subr.bf16.mxu0 0
    %1698 = vmatpush1.bf16.msra.mxu0 0
    %1699 = vmatprep.subr.bf16.mxu0 0
    %1700 = vmatpush1.bf16.msra.mxu0 0
    %1701 = vmatprep.subr.bf16.mxu0 0
    %1702 = vmatpush1.bf16.msra.mxu0 0
    %1703 = vmatprep.subr.bf16.mxu0 0
    %1704 = vmatpush1.bf16.msra.mxu0 0
    %1705 = vmatprep.subr.bf16.mxu0 0
    %1706 = vmatpush1.bf16.msra.mxu0 0
    %1707 = vmatprep.subr.bf16.mxu0 0
    %1708 = vmatpush1.bf16.msra.mxu0 0
    %1709 = vmatprep.subr.bf16.mxu0 0
    %1710 = vmatpush1.bf16.msra.mxu0 0
    %1711 = vmatprep.subr.bf16.mxu0 0
    %1712 = vmatpush1.bf16.msra.mxu0 0
    %1713 = vmatprep.mubr.bf16.mxu0 0
    %1714 = vmatmul.mubr.bf16.gmra.mrb[0].mxu0 %v1625
    %v1715 = vpop.f32.mrb[0].mxu0
    %v1716 = vadd.f32 %v1607, %v1715
    %v1717 = vpop.f32.mrb[0].mxu0
    %v1718 = vpop.f32.mrb[0].mxu0
    %v1719 = vadd.f32 %v1607, %v1718
    %v1720 = vpop.f32.mrb[0].mxu0
    %1721 = vmatprep.mubr.bf16.mxu0 0
    %1722 = vmatmul.mubr.bf16.gmra.mrb[0].mxu0 %v1626
    %v1723 = vpop.f32.mrb[0].mxu0
    %v1724 = vadd.f32 %v1607, %v1723
    %v1725 = vpop.f32.mrb[0].mxu0
    %v1726 = vpop.f32.mrb[0].mxu0
    %v1727 = vadd.f32 %v1607, %v1726
    %v1728 = vpop.f32.mrb[0].mxu0
    %1729 = vmatprep.mubr.bf16.mxu0 0
    %1730 = vmatmul.mubr.bf16.gmra.mrb[0].mxu0 %v1627
    %v1731 = vpop.f32.mrb[0].mxu0
    %v1732 = vadd.f32 %v1607, %v1731
    %v1733 = vpop.f32.mrb[0].mxu0
    %v1734 = vpop.f32.mrb[0].mxu0
    %v1735 = vadd.f32 %v1607, %v1734
    %v1736 = vpop.f32.mrb[0].mxu0
    %1737 = vmatprep.mubr.bf16.mxu0 0
    %1738 = vmatmul.mubr.bf16.gmra.mrb[0].mxu0 %v1628
    %v1739 = vpop.f32.mrb[0].mxu0
    %v1740 = vadd.f32 %v1607, %v1739
    %v1741 = vpop.f32.mrb[0].mxu0
    %v1742 = vpop.f32.mrb[0].mxu0
    %v1743 = vadd.f32 %v1607, %v1742
    %v1744 = vpop.f32.mrb[0].mxu0
    %1745 = vdwg.mxu0
    %1746 = vst [vmem:[#allocation10] sm:$0xff] %v1716
    %1747 = vst [vmem:[#allocation10 + $0x8] sm:$0xff] %v1719
    %1748 = vst [vmem:[#allocation10 + $0x10] sm:$0xff] %v1724
    %1749 = vst [vmem:[#allocation10 + $0x18] sm:$0xff] %v1727
    %1750 = vst [vmem:[#allocation10 + $0x20] sm:$0xff] %v1732
    %1751 = vst [vmem:[#allocation10 + $0x28] sm:$0xff] %v1735
    %1752 = vst [vmem:[#allocation10 + $0x30] sm:$0xff] %v1740
    %1753 = vst [vmem:[#allocation10 + $0x38] sm:$0xff] %v1743
    // Predicated region
    $region42: #{tpu_custom_call.1} parent=1 // pred_check
      _
    $region43: #{tpu_custom_call.1} parent=1 // pred_check_branch
      %1755 = sbr.rel (0) target = $region45
    $region44: #{tpu_custom_call.1} parent=1 // pred_region
      %s1757 = ssub.s32 1024, 1024
      %1758 = vsyncadd [#allocation6], %s1757
      %s1759 = sshll.u32 [#allocation10], 4
      %s1760 = int_to_ptr.vmem [resolvable:$true] %s1759
      %1765 = dma.vmem_to_hbm [thread:$0]  %s1760, 1024, %s7, [#allocation6], 128, 128, 8
    $region45: #{tpu_custom_call.1} parent=1 // pred_fallthru
      _
    // Predicated region
    $region46: #{tpu_custom_call.1} parent=1 // pred_check
      _
    $region47: #{tpu_custom_call.1} parent=1 // pred_check_branch
      %1767 = sbr.rel (0) target = $region49
    $region48: #{tpu_custom_call.1} parent=1 // pred_region
      %1768 = dma.done [#allocation6], 1024
    $region49: #{tpu_custom_call.1} parent=1 // pred_fallthru
      _
    %1769 = vsyncpa [#allocation5], 1
    %1770 = vsyncpa [#allocation8], 1
    %1771 = vsyncpa [#allocation6], 1

</llo_original>
